<compile_context>
chip_gen: v7x
topology: tpu7x:2x2x1
jax: 0.10.0
libtpu: 0.0.40
codegen_flags: <defaults>
</compile_context>

<pallas_src>
import math

import jax
import jax.numpy as jnp
from jax.experimental import pallas as pl
from jax.experimental.pallas import tpu as pltpu


def _forrier_mlp_kernel(x_ref, w1_ref, b1_ref, w2_ref, b2_ref, wb_ref, bb_ref, o_ref):
    # x_ref:  (tm, C)  f32 tile of input features (cast to bf16 in-kernel)
    # w1_ref: (C, D)   bf16    b1_ref: (1, D)  f32
    # w2_ref: (D, D)   bf16    b2_ref: (1, D)  f32
    # wb_ref: (D, T)   bf16  = W3 @ basis (folded on host, f32 compute, bf16 cast)
    # bb_ref: (1, T)   f32   = b3 @ basis
    # o_ref:  (tm, T)  output tile (f32 or bf16)
    x = x_ref[...].astype(jnp.bfloat16)
    h1 = jnp.dot(x, w1_ref[...], preferred_element_type=jnp.float32) + b1_ref[...]
    h1 = jnp.maximum(h1, 0.0).astype(jnp.bfloat16)       # ReLU in f32, bf16 MXU operand
    h2 = jnp.dot(h1, w2_ref[...], preferred_element_type=jnp.float32) + b2_ref[...]
    h2 = jnp.maximum(h2, 0.0).astype(jnp.bfloat16)
    out = jnp.dot(h2, wb_ref[...], preferred_element_type=jnp.float32) + bb_ref[...]
    o_ref[...] = out.astype(o_ref.dtype)


def _round_up(x, m):
    return ((x + m - 1) // m) * m


def _choose_tile_rows(Ns, tm_req):
    # Multiple of 256 (MXU M granularity on v6e/v7x; also a 128 multiple for v5e),
    # clamped so padding never exceeds one tile.
    tm = min(max(tm_req, 256), _round_up(max(Ns, 1), 256))
    return _round_up(tm, 256)


def forrier_dy_render_forward(features, params, basis, *, tm=512, out_dtype=jnp.float32):
    """features: (Ns, inChanel) f32 -> (out, 0) with out: (Ns, total_time) out_dtype."""
    Ns, C = features.shape
    w1, b1, w2, b2, w3, b3 = params
    D = w1.shape[1]
    Fd = w3.shape[1]           # 2 * n_time_embedding + 1
    T = basis.shape[1]         # total_time
    assert basis.shape[0] == Fd

    # Host-side fold of the fixed Fourier projection into the last Linear (f32 math,
    # cast-to-bf16 late).  Removes the ragged Fd dimension from the kernel.
    wb = jnp.dot(w3, basis, preferred_element_type=jnp.float32).astype(jnp.bfloat16)  # (D, T)
    bb = jnp.dot(b3, basis, preferred_element_type=jnp.float32)                       # (1, T) f32

    w1_bf = w1.astype(jnp.bfloat16)
    w2_bf = w2.astype(jnp.bfloat16)

    tm = _choose_tile_rows(Ns, tm)
    Ns_pad = _round_up(Ns, tm)          # padding <= one tile
    x = features
    if Ns_pad != Ns:
        x = jnp.pad(x, ((0, Ns_pad - Ns), (0, 0)))
    grid = (Ns_pad // tm,)

    out_bytes = jnp.dtype(out_dtype).itemsize
    flops = 2 * Ns_pad * (C * D + D * D + D * T)
    bytes_accessed = (
        Ns_pad * C * 4                        # features (f32)
        + (C * D + D * D + D * T) * 2         # W1, W2, folded Wb (bf16)
        + (D + D + T) * 4                     # biases (f32)
        + Ns_pad * T * out_bytes)             # output

    out = pl.pallas_call(
        _forrier_mlp_kernel,
        out_shape=jax.ShapeDtypeStruct((Ns_pad, T), out_dtype),
        grid_spec=pltpu.PrefetchScalarGridSpec(
            num_scalar_prefetch=0,
            grid=grid,
            in_specs=[
                pl.BlockSpec((tm, C), lambda i: (i, 0)),    # features tile
                pl.BlockSpec((C, D), lambda i: (0, 0)),     # W1 (resident)
                pl.BlockSpec((1, D), lambda i: (0, 0)),     # b1
                pl.BlockSpec((D, D), lambda i: (0, 0)),     # W2
                pl.BlockSpec((1, D), lambda i: (0, 0)),     # b2
                pl.BlockSpec((D, T), lambda i: (0, 0)),     # folded W3 @ basis
                pl.BlockSpec((1, T), lambda i: (0, 0)),     # folded b3 @ basis
            ],
            out_specs=pl.BlockSpec((tm, T), lambda i: (i, 0)),
        ),
        compiler_params=pltpu.CompilerParams(
            dimension_semantics=("parallel",)),
        cost_estimate=pl.CostEstimate(
            flops=flops, transcendentals=0, bytes_accessed=bytes_accessed),
    )(x, w1_bf, b1, w2_bf, b2, wb, bb)

    out = out[:Ns]
    # Mirrors: output.reshape(Ns, -1, total_time).transpose(1, 2).squeeze(-1)
    # (the middle dim is 1 when using_view=False).
    return out, 0


def xavier_uniform(key, fan_in, fan_out, gain=1.0):
    bound = gain * math.sqrt(6.0 / (fan_in + fan_out))
    return jax.random.uniform(key, (fan_in, fan_out), jnp.float32, -bound, bound)


def init_params(key, in_mlpC, featureD, out_dim):
    k1, k2, k3 = jax.random.split(key, 3)
    w1 = xavier_uniform(k1, in_mlpC, featureD)
    b1 = jnp.zeros((1, featureD), jnp.float32)
    w2 = xavier_uniform(k2, featureD, featureD)
    b2 = jnp.zeros((1, featureD), jnp.float32)
    w3 = xavier_uniform(k3, featureD, out_dim)
    b3 = jnp.zeros((1, out_dim), jnp.float32)
    return (w1, b1, w2, b2, w3, b3)


def make_forrier_basis(n_time_embedding, total_time):
    # Rows: [1, cos(1*w*t), sin(1*w*t), cos(2*w*t), sin(2*w*t), ...], w = 2*pi/total_time
    t = jnp.arange(total_time, dtype=jnp.float32)
    n = jnp.arange(1, n_time_embedding + 1, dtype=jnp.float32)
    ang = 2.0 * math.pi * n[:, None] * t[None, :] / total_time
    inter = jnp.stack([jnp.cos(ang), jnp.sin(ang)], axis=1)
    inter = inter.reshape(2 * n_time_embedding, total_time)
    return jnp.concatenate([jnp.ones((1, total_time), jnp.float32), inter], axis=0)


def reference_forward_f32(features, params, basis):
    w1, b1, w2, b2, w3, b3 = params
    h1 = jnp.maximum(features @ w1 + b1, 0.0)
    h2 = jnp.maximum(h1 @ w2 + b2, 0.0)
    freq = h2 @ w3 + b3
    return freq @ basis


def reference_forward_bf16(features, params, basis):
    # Mirrors the kernel's math exactly: host-folded W3@basis (f32 compute, bf16 cast),
    # bf16 MXU operands, f32 accumulation, f32 biases/ReLU.
    w1, b1, w2, b2, w3, b3 = params
    bf = jnp.bfloat16
    wb = jnp.dot(w3, basis, preferred_element_type=jnp.float32).astype(bf)
    bb = jnp.dot(b3, basis, preferred_element_type=jnp.float32)
    x = features.astype(bf)
    h1 = jnp.dot(x, w1.astype(bf), preferred_element_type=jnp.float32) + b1
    h1 = jnp.maximum(h1, 0.0).astype(bf)
    h2 = jnp.dot(h1, w2.astype(bf), preferred_element_type=jnp.float32) + b2
    h2 = jnp.maximum(h2, 0.0).astype(bf)
    return jnp.dot(h2, wb, preferred_element_type=jnp.float32) + bb


if __name__ == "__main__":
    # Module defaults (using_view=False): n_time_embedding=60 -> out_dim=121,
    # total_time=300, featureD=128.  Small point count Ns=1000 (deliberately not a
    # multiple of the row tile, to exercise the round-up + padding path; tm=512
    # gives an even 2-step grid).
    Ns, inChanel, featureD = 1000, 32, 128
    n_time_embedding, total_time = 60, 300
    out_dim = 2 * n_time_embedding + 1

    key = jax.random.PRNGKey(0)
    k_feat, k_param = jax.random.split(key)

    features = jax.random.normal(k_feat, (Ns, inChanel), jnp.float32)
    params = init_params(k_param, inChanel, featureD, out_dim)
    basis = make_forrier_basis(n_time_embedding, total_time)

    # TODO(synk): using_view=True branch (viewdir positional encoding + sigmoid) and
    # the temporal_indices gather paths are not exercised (module defaults: False / None).

    out, aux = forrier_dy_render_forward(features, params, basis, tm=512)
    out = jax.block_until_ready(out)

    assert out.shape == (Ns, total_time)
    assert out.dtype == jnp.float32
    assert aux == 0

    # Tight check against a reference using the exact same folded bf16-operand /
    # f32-accumulate math.
    ref_bf16 = reference_forward_bf16(features, params, basis)
    assert jnp.allclose(out, ref_bf16, atol=5e-3, rtol=5e-3)

    # Loose sanity check against the full-f32 module math (difference = bf16 operand rounding).
    ref_f32 = reference_forward_f32(features, params, basis)
    scale = jnp.max(jnp.abs(ref_f32))
    assert jnp.max(jnp.abs(out - ref_f32)) <= 0.05 * scale + 1e-3

    # bf16-output variant: halves the dominant HBM write traffic (use when downstream
    # math tolerates bf16 outputs).
    out_bf, _ = forrier_dy_render_forward(features, params, basis, tm=512,
                                          out_dtype=jnp.bfloat16)
    out_bf = jax.block_until_ready(out_bf)
    assert out_bf.shape == (Ns, total_time) and out_bf.dtype == jnp.bfloat16
    assert jnp.max(jnp.abs(out_bf.astype(jnp.float32) - ref_f32)) <= 0.05 * scale + 1e-2

    print("KERNEL_OK")
</pallas_src>

<mosaic_0001>
module attributes {stable_mosaic.version = 11 : i64} {
  func.func @_forrier_mlp_kernel(%arg0: i32, %arg1: memref<512x32xf32, #tpu.memory_space<vmem>>, %arg2: memref<32x128xbf16, #tpu.memory_space<vmem>>, %arg3: memref<1x128xf32, #tpu.memory_space<vmem>>, %arg4: memref<128x128xbf16, #tpu.memory_space<vmem>>, %arg5: memref<1x128xf32, #tpu.memory_space<vmem>>, %arg6: memref<128x300xbf16, #tpu.memory_space<vmem>>, %arg7: memref<1x300xf32, #tpu.memory_space<vmem>>, %arg8: memref<512x300xf32, #tpu.memory_space<vmem>>) attributes {dimension_semantics = [#tpu.dimension_semantics<parallel>], iteration_bounds = array<i64: 2>, scalar_prefetch = 0 : i64, scratch_operands = 0 : i64, tpu.core_type = #tpu.core_type<tc>, window_params = [{transform_indices = @transform_0, window_bounds = array<i64: 512, 32>}, {pipeline_mode = #tpu.pipeline_mode<synchronous>, transform_indices = @transform_1, window_bounds = array<i64: 32, 128>}, {pipeline_mode = #tpu.pipeline_mode<synchronous>, transform_indices = @transform_2, window_bounds = array<i64: 1, 128>}, {pipeline_mode = #tpu.pipeline_mode<synchronous>, transform_indices = @transform_3, window_bounds = array<i64: 128, 128>}, {pipeline_mode = #tpu.pipeline_mode<synchronous>, transform_indices = @transform_4, window_bounds = array<i64: 1, 128>}, {pipeline_mode = #tpu.pipeline_mode<synchronous>, transform_indices = @transform_5, window_bounds = array<i64: 128, 300>}, {pipeline_mode = #tpu.pipeline_mode<synchronous>, transform_indices = @transform_6, window_bounds = array<i64: 1, 300>}, {transform_indices = @transform_7, window_bounds = array<i64: 512, 300>}]} {
    %c0 = arith.constant 0 : index
    %c0_0 = arith.constant 0 : index
    %0 = vector.load %arg1[%c0, %c0_0] : memref<512x32xf32, #tpu.memory_space<vmem>>, vector<512x32xf32>
    %1 = arith.truncf %0 : vector<512x32xf32> to vector<512x32xbf16>
    %c0_1 = arith.constant 0 : index
    %c0_2 = arith.constant 0 : index
    %2 = vector.load %arg2[%c0_1, %c0_2] : memref<32x128xbf16, #tpu.memory_space<vmem>>, vector<32x128xbf16>
    %cst = arith.constant dense<0.000000e+00> : vector<512x128xf32>
    %3 = tpu.matmul %1, %2, %cst {dimension_numbers = #tpu.dot_dimension_numbers<[1], [0], [0], [1], [0, 0, 1, 1], [], []>} : vector<512x32xbf16>, vector<32x128xbf16>, vector<512x128xf32> -> vector<512x128xf32>
    %c0_3 = arith.constant 0 : index
    %c0_4 = arith.constant 0 : index
    %4 = vector.load %arg3[%c0_3, %c0_4] : memref<1x128xf32, #tpu.memory_space<vmem>>, vector<1x128xf32>
    %5 = vector.broadcast %4 : vector<1x128xf32> to vector<512x128xf32>
    %6 = arith.addf %3, %5 : vector<512x128xf32>
    %cst_5 = arith.constant 0.000000e+00 : f32
    %7 = vector.broadcast %cst_5 : f32 to vector<512x128xf32>
    %8 = arith.maximumf %6, %7 : vector<512x128xf32>
    %9 = arith.truncf %8 : vector<512x128xf32> to vector<512x128xbf16>
    %c0_6 = arith.constant 0 : index
    %c0_7 = arith.constant 0 : index
    %10 = vector.load %arg4[%c0_6, %c0_7] : memref<128x128xbf16, #tpu.memory_space<vmem>>, vector<128x128xbf16>
    %cst_8 = arith.constant dense<0.000000e+00> : vector<512x128xf32>
    %11 = tpu.matmul %9, %10, %cst_8 {dimension_numbers = #tpu.dot_dimension_numbers<[1], [0], [0], [1], [0, 0, 1, 1], [], []>} : vector<512x128xbf16>, vector<128x128xbf16>, vector<512x128xf32> -> vector<512x128xf32>
    %c0_9 = arith.constant 0 : index
    %c0_10 = arith.constant 0 : index
    %12 = vector.load %arg5[%c0_9, %c0_10] : memref<1x128xf32, #tpu.memory_space<vmem>>, vector<1x128xf32>
    %13 = vector.broadcast %12 : vector<1x128xf32> to vector<512x128xf32>
    %14 = arith.addf %11, %13 : vector<512x128xf32>
    %cst_11 = arith.constant 0.000000e+00 : f32
    %15 = vector.broadcast %cst_11 : f32 to vector<512x128xf32>
    %16 = arith.maximumf %14, %15 : vector<512x128xf32>
    %17 = arith.truncf %16 : vector<512x128xf32> to vector<512x128xbf16>
    %c0_12 = arith.constant 0 : index
    %c0_13 = arith.constant 0 : index
    %18 = vector.load %arg6[%c0_12, %c0_13] : memref<128x300xbf16, #tpu.memory_space<vmem>>, vector<128x300xbf16>
    %cst_14 = arith.constant dense<0.000000e+00> : vector<512x300xf32>
    %19 = tpu.matmul %17, %18, %cst_14 {dimension_numbers = #tpu.dot_dimension_numbers<[1], [0], [0], [1], [0, 0, 1, 1], [], []>} : vector<512x128xbf16>, vector<128x300xbf16>, vector<512x300xf32> -> vector<512x300xf32>
    %c0_15 = arith.constant 0 : index
    %c0_16 = arith.constant 0 : index
    %20 = vector.load %arg7[%c0_15, %c0_16] : memref<1x300xf32, #tpu.memory_space<vmem>>, vector<1x300xf32>
    %21 = vector.broadcast %20 : vector<1x300xf32> to vector<512x300xf32>
    %22 = arith.addf %19, %21 : vector<512x300xf32>
    %c0_17 = arith.constant 0 : index
    %c0_18 = arith.constant 0 : index
    %23 = vector.load %arg8[%c0_17, %c0_18] : memref<512x300xf32, #tpu.memory_space<vmem>>, vector<512x300xf32>
    tpu.vector_store %arg8[%c0_17, %c0_18], %22 {strides = array<i32>} : memref<512x300xf32, #tpu.memory_space<vmem>>, vector<512x300xf32>,
    return
  }
  func.func @transform_0(%arg0: i32) -> (i32, i32) {
    %c0_i32 = arith.constant 0 : i32
    %c0_i32_0 = arith.constant 0 : i32
    return %arg0, %c0_i32 : i32, i32
  }
  func.func @transform_1(%arg0: i32) -> (i32, i32) {
    %c0_i32 = arith.constant 0 : i32
    %c0_i32_0 = arith.constant 0 : i32
    %c0_i32_1 = arith.constant 0 : i32
    return %c0_i32, %c0_i32_0 : i32, i32
  }
  func.func @transform_2(%arg0: i32) -> (i32, i32) {
    %c0_i32 = arith.constant 0 : i32
    %c0_i32_0 = arith.constant 0 : i32
    %c0_i32_1 = arith.constant 0 : i32
    return %c0_i32, %c0_i32_0 : i32, i32
  }
  func.func @transform_3(%arg0: i32) -> (i32, i32) {
    %c0_i32 = arith.constant 0 : i32
    %c0_i32_0 = arith.constant 0 : i32
    %c0_i32_1 = arith.constant 0 : i32
    return %c0_i32, %c0_i32_0 : i32, i32
  }
  func.func @transform_4(%arg0: i32) -> (i32, i32) {
    %c0_i32 = arith.constant 0 : i32
    %c0_i32_0 = arith.constant 0 : i32
    %c0_i32_1 = arith.constant 0 : i32
    return %c0_i32, %c0_i32_0 : i32, i32
  }
  func.func @transform_5(%arg0: i32) -> (i32, i32) {
    %c0_i32 = arith.constant 0 : i32
    %c0_i32_0 = arith.constant 0 : i32
    %c0_i32_1 = arith.constant 0 : i32
    return %c0_i32, %c0_i32_0 : i32, i32
  }
  func.func @transform_6(%arg0: i32) -> (i32, i32) {
    %c0_i32 = arith.constant 0 : i32
    %c0_i32_0 = arith.constant 0 : i32
    %c0_i32_1 = arith.constant 0 : i32
    return %c0_i32, %c0_i32_0 : i32, i32
  }
  func.func @transform_7(%arg0: i32) -> (i32, i32) {
    %c0_i32 = arith.constant 0 : i32
    %c0_i32_0 = arith.constant 0 : i32
    return %arg0, %c0_i32 : i32, i32
  }
}

</mosaic_0001>

<llo_original>
// kernel: tpu_custom_call.1
$region0: #{tpu_custom_call.1}
  #allocation0 [shape = 'u32[]', space=smem, size = 0x4, offset = 0x4, fixed_abs, tag = 'smem constant byte address 0x4 - core index']
  #allocation1 [shape = 'u32[144,128]{1,0:T(1,128)}', space=vmem, size = 0x12000, scoped, tag = 'internal scratch']
  %s0 = inlined_call_operand.vmem [shape: f32[1024,32], index: 0, kind: input, shape index: {}]
  %s1 = inlined_call_operand.hbm [shape: bf16[32,128], index: 1, kind: input, shape index: {}]
  %s2 = inlined_call_operand.hbm [shape: f32[1,128], index: 2, kind: input, shape index: {}]
  %s3 = inlined_call_operand.hbm [shape: bf16[128,128], index: 3, kind: input, shape index: {}]
  %s4 = inlined_call_operand.hbm [shape: f32[1,128], index: 4, kind: input, shape index: {}]
  %s5 = inlined_call_operand.vmem [shape: bf16[128,300], index: 5, kind: input, shape index: {}]
  %s6 = inlined_call_operand.hbm [shape: f32[1,300], index: 6, kind: input, shape index: {}]
  %s7 = inlined_call_operand.vmem [shape: f32[1024,300], index: 7, kind: output, shape index: {}]
  %s8 = sld [smem:[#allocation0]]
  $region81: #{tpu_custom_call.1} parent=0
    _
  %s10 = ssub.s32 1, %s8
  %s11 = scalar_select 0, %s10, %s8
  $region1: #{tpu_custom_call.1} parent=0
    #allocation2 [shape = 'u8[8192]{0}', space=vmem, size = 0x2000, scoped, tag = 'input window, operand 1, single buffered']
    #allocation3 [shape = 's32[2]{0}', space=sflag, size = 0x8, scoped, tag = 'scoped memory for tpu_custom_call.1']
    #allocation4 [shape = 'u8[512]{0}', space=vmem, size = 0x400, scoped, tag = 'input window, operand 2, single buffered']
    #allocation5 [shape = 's32[1]{0}', space=sflag, size = 0x4, scoped, tag = 'scoped memory for tpu_custom_call.1']
    #allocation6 [shape = 'u8[32768]{0}', space=vmem, size = 0x8000, scoped, tag = 'input window, operand 3, single buffered']
    #allocation7 [shape = 'u8[512]{0}', space=vmem, size = 0x400, scoped, tag = 'input window, operand 4, single buffered']
    #allocation8 [shape = 's32[1]{0}', space=sflag, size = 0x4, scoped, tag = 'scoped memory for tpu_custom_call.1']
    #allocation9 [shape = 'u8[1536]{0}', space=vmem, size = 0x800, scoped, tag = 'input window, operand 6, single buffered']
    %12 = vsyncpa [#allocation3], 0
    %13 = vsyncpa [#allocation5], 0
    %14 = vsyncpa [#allocation8], 0
    loop: start=0, step=1, limit=4
    $region2: #{tpu_custom_call.1} parent=1 // loop_pre_header
      _
    $region3: #{tpu_custom_call.1} parent=1 // loop_header
      %s16 = sphi 0, %s20
      %p17 = scmp.ge.s32.totalorder %s16, 4
      %s26 = sphi 0, %s28
      %s29 = sphi 0, %s26
      %s30 = sphi 0, %s29
      %s46 = sphi 0, %s30
      %s50 = sphi 0, %s50
      %s52 = sphi 0, %s50
      %s53 = sphi 0, %s52
      %s67 = sphi 0, %s53
      %s71 = sphi 0, %s71
      %s73 = sphi 0, %s71
      %s74 = sphi 0, %s73
      %s88 = sphi 0, %s74
      %s92 = sphi 0, %s92
      %s94 = sphi 0, %s92
      %s95 = sphi 0, %s94
      %s109 = sphi 0, %s95
      %s113 = sphi 0, %s113
      %s115 = sphi 0, %s113
      %s116 = sphi 0, %s115
      %s130 = sphi 0, %s116
      %s134 = sphi 0, %s134
      %s136 = sphi 0, %s134
      %s137 = sphi 0, %s136
      %s151 = sphi 0, %s137
      %s155 = sphi 0, %s155
      %s157 = sphi 0, %s155
      %s158 = sphi 0, %s157
      %s172 = sphi 0, %s158
      %s178 = sphi 0, %s180
      %s181 = sphi 0, %s178
      %s182 = sphi 0, %s181
      %s198 = sphi 0, %s182
    $region4: #{tpu_custom_call.1} parent=1 // loop_header_branch
      %19 = sbr.rel (%p17) target = $region8
    $region5: #{tpu_custom_call.1} parent=1 // loop_body
      %s21 = ssub.s32 %s16, 1
      %s22 = ssub.s32 %s16, 2
      %s23 = sadd.s32 %s16, 1
      %s24 = ssub.s32 %s16, %s23
      %p25 = scmp.eq.s32.totalorder %s24, 0
      %s27 = sadd.s32 %s26, 1
      %s28 = scalar_select %p25, %s26, %s27
      %p31 = pneg %p25
      %p32 = scmp.eq.s32.totalorder %s16, 1
      %p33 = por %p31, %p32
      %p34 = scmp.ne.s32.totalorder %s26, %s29
      %p35 = scmp.eq.s32.totalorder %s16, 0
      %p36 = por %p34, %p35
      %p37 = scmp.ne.s32.totalorder %s26, %s29
      %p38 = scmp.eq.s32.totalorder %s21, 1
      %p39 = por %p37, %p38
      %p40 = scmp.ne.s32.totalorder %s29, %s30
      %p41 = scmp.eq.s32.totalorder %s21, 0
      %p42 = por %p40, %p41
      %p43 = scmp.ne.s32.totalorder %s29, %s30
      %p44 = scmp.eq.s32.totalorder %s22, 1
      %p45 = por %p43, %p44
      %p47 = scmp.ne.s32.totalorder %s30, %s46
      %p48 = scmp.eq.s32.totalorder %s22, 0
      %p49 = por %p47, %p48
      %s51 = sadd.s32 %s50, 1
      %p54 = scmp.eq.s32.totalorder %s16, 1
      %p55 = scmp.ne.s32.totalorder %s50, %s52
      %p56 = scmp.eq.s32.totalorder %s16, 0
      %p57 = por %p55, %p56
      %p58 = scmp.ne.s32.totalorder %s50, %s52
      %p59 = scmp.eq.s32.totalorder %s21, 1
      %p60 = por %p58, %p59
      %p61 = scmp.ne.s32.totalorder %s52, %s53
      %p62 = scmp.eq.s32.totalorder %s21, 0
      %p63 = por %p61, %p62
      %p64 = scmp.ne.s32.totalorder %s52, %s53
      %p65 = scmp.eq.s32.totalorder %s22, 1
      %p66 = por %p64, %p65
      %p68 = scmp.ne.s32.totalorder %s53, %s67
      %p69 = scmp.eq.s32.totalorder %s22, 0
      %p70 = por %p68, %p69
      %s72 = sadd.s32 %s71, 1
      %p75 = scmp.eq.s32.totalorder %s16, 1
      %p76 = scmp.ne.s32.totalorder %s71, %s73
      %p77 = scmp.eq.s32.totalorder %s16, 0
      %p78 = por %p76, %p77
      %p79 = scmp.ne.s32.totalorder %s71, %s73
      %p80 = scmp.eq.s32.totalorder %s21, 1
      %p81 = por %p79, %p80
      %p82 = scmp.ne.s32.totalorder %s73, %s74
      %p83 = scmp.eq.s32.totalorder %s21, 0
      %p84 = por %p82, %p83
      %p85 = scmp.ne.s32.totalorder %s73, %s74
      %p86 = scmp.eq.s32.totalorder %s22, 1
      %p87 = por %p85, %p86
      %p89 = scmp.ne.s32.totalorder %s74, %s88
      %p90 = scmp.eq.s32.totalorder %s22, 0
      %p91 = por %p89, %p90
      %s93 = sadd.s32 %s92, 1
      %p96 = scmp.eq.s32.totalorder %s16, 1
      %p97 = scmp.ne.s32.totalorder %s92, %s94
      %p98 = scmp.eq.s32.totalorder %s16, 0
      %p99 = por %p97, %p98
      %p100 = scmp.ne.s32.totalorder %s92, %s94
      %p101 = scmp.eq.s32.totalorder %s21, 1
      %p102 = por %p100, %p101
      %p103 = scmp.ne.s32.totalorder %s94, %s95
      %p104 = scmp.eq.s32.totalorder %s21, 0
      %p105 = por %p103, %p104
      %p106 = scmp.ne.s32.totalorder %s94, %s95
      %p107 = scmp.eq.s32.totalorder %s22, 1
      %p108 = por %p106, %p107
      %p110 = scmp.ne.s32.totalorder %s95, %s109
      %p111 = scmp.eq.s32.totalorder %s22, 0
      %p112 = por %p110, %p111
      %s114 = sadd.s32 %s113, 1
      %p117 = scmp.eq.s32.totalorder %s16, 1
      %p118 = scmp.ne.s32.totalorder %s113, %s115
      %p119 = scmp.eq.s32.totalorder %s16, 0
      %p120 = por %p118, %p119
      %p121 = scmp.ne.s32.totalorder %s113, %s115
      %p122 = scmp.eq.s32.totalorder %s21, 1
      %p123 = por %p121, %p122
      %p124 = scmp.ne.s32.totalorder %s115, %s116
      %p125 = scmp.eq.s32.totalorder %s21, 0
      %p126 = por %p124, %p125
      %p127 = scmp.ne.s32.totalorder %s115, %s116
      %p128 = scmp.eq.s32.totalorder %s22, 1
      %p129 = por %p127, %p128
      %p131 = scmp.ne.s32.totalorder %s116, %s130
      %p132 = scmp.eq.s32.totalorder %s22, 0
      %p133 = por %p131, %p132
      %s135 = sadd.s32 %s134, 1
      %p138 = scmp.eq.s32.totalorder %s16, 1
      %p139 = scmp.ne.s32.totalorder %s134, %s136
      %p140 = scmp.eq.s32.totalorder %s16, 0
      %p141 = por %p139, %p140
      %p142 = scmp.ne.s32.totalorder %s134, %s136
      %p143 = scmp.eq.s32.totalorder %s21, 1
      %p144 = por %p142, %p143
      %p145 = scmp.ne.s32.totalorder %s136, %s137
      %p146 = scmp.eq.s32.totalorder %s21, 0
      %p147 = por %p145, %p146
      %p148 = scmp.ne.s32.totalorder %s136, %s137
      %p149 = scmp.eq.s32.totalorder %s22, 1
      %p150 = por %p148, %p149
      %p152 = scmp.ne.s32.totalorder %s137, %s151
      %p153 = scmp.eq.s32.totalorder %s22, 0
      %p154 = por %p152, %p153
      %s156 = sadd.s32 %s155, 1
      %p159 = scmp.eq.s32.totalorder %s16, 1
      %p160 = scmp.ne.s32.totalorder %s155, %s157
      %p161 = scmp.eq.s32.totalorder %s16, 0
      %p162 = por %p160, %p161
      %p163 = scmp.ne.s32.totalorder %s155, %s157
      %p164 = scmp.eq.s32.totalorder %s21, 1
      %p165 = por %p163, %p164
      %p166 = scmp.ne.s32.totalorder %s157, %s158
      %p167 = scmp.eq.s32.totalorder %s21, 0
      %p168 = por %p166, %p167
      %p169 = scmp.ne.s32.totalorder %s157, %s158
      %p170 = scmp.eq.s32.totalorder %s22, 1
      %p171 = por %p169, %p170
      %p173 = scmp.ne.s32.totalorder %s158, %s172
      %p174 = scmp.eq.s32.totalorder %s22, 0
      %p175 = por %p173, %p174
      %s176 = ssub.s32 %s16, %s23
      %p177 = scmp.eq.s32.totalorder %s176, 0
      %s179 = sadd.s32 %s178, 1
      %s180 = scalar_select %p177, %s178, %s179
      %p183 = pneg %p177
      %p184 = scmp.eq.s32.totalorder %s16, 1
      %p185 = por %p183, %p184
      %p186 = scmp.ne.s32.totalorder %s178, %s181
      %p187 = scmp.eq.s32.totalorder %s16, 0
      %p188 = por %p186, %p187
      %p189 = scmp.ne.s32.totalorder %s178, %s181
      %p190 = scmp.eq.s32.totalorder %s21, 1
      %p191 = por %p189, %p190
      %p192 = scmp.ne.s32.totalorder %s181, %s182
      %p193 = scmp.eq.s32.totalorder %s21, 0
      %p194 = por %p192, %p193
      %p195 = scmp.ne.s32.totalorder %s181, %s182
      %p196 = scmp.eq.s32.totalorder %s22, 1
      %p197 = por %p195, %p196
      %p199 = scmp.ne.s32.totalorder %s182, %s198
      %p200 = scmp.eq.s32.totalorder %s22, 0
      %p201 = por %p199, %p200
      %p202 = scmp.le.s32.totalorder 1, %s16
      %p203 = scmp.lt.s32.totalorder %s16, 3
      %p204 = pnand %p202, %p203
      %p205 = pneg %p204
      // Predicated region
      $region9: #{tpu_custom_call.1} parent=5 // pred_check
        _
      $region10: #{tpu_custom_call.1} parent=5 // pred_check_branch
        %207 = sbr.rel (%p204) target = $region12
      $region11: #{tpu_custom_call.1} parent=5 // pred_region
        %s208 = ssub.s32 %s16, 1
        // Predicated region
        $region13: #{tpu_custom_call.1} parent=11 // pred_check
          %p209 = pneg %p63
        $region14: #{tpu_custom_call.1} parent=11 // pred_check_branch
          %211 = sbr.rel (%p209) target = $region16
        $region15: #{tpu_custom_call.1} parent=11 // pred_region
          %s213 = ssub.s32 256, 256
          %214 = vsyncadd [#allocation3], %s213
          %s215 = sshll.u32 [#allocation2], 4
          %s216 = int_to_ptr.vmem [resolvable:$true] %s215
          %221 = dma.hbm_to_vmem [thread:$0]  %s1, 256, %s216, [#allocation3], 64, 64, 4
        $region16: #{tpu_custom_call.1} parent=11 // pred_fallthru
          _
        // Predicated region
        $region17: #{tpu_custom_call.1} parent=11 // pred_check
          %p222 = pneg %p84
        $region18: #{tpu_custom_call.1} parent=11 // pred_check_branch
          %224 = sbr.rel (%p222) target = $region20
        $region19: #{tpu_custom_call.1} parent=11 // pred_region
          %s226 = ssub.s32 16, 16
          %227 = vsyncadd [#allocation5], %s226
          %s229 = sshll.u32 [#allocation4], 4
          %s230 = int_to_ptr.vmem [resolvable:$true] %s229
          %232 = dma.hbm_to_vmem [thread:$0]  %s2, 16, %s230, [#allocation5]
        $region20: #{tpu_custom_call.1} parent=11 // pred_fallthru
          _
        // Predicated region
        $region21: #{tpu_custom_call.1} parent=11 // pred_check
          %p233 = pneg %p105
        $region22: #{tpu_custom_call.1} parent=11 // pred_check_branch
          %235 = sbr.rel (%p233) target = $region24
        $region23: #{tpu_custom_call.1} parent=11 // pred_region
          %s237 = ssub.s32 1024, 1024
          %238 = vsyncadd [#allocation5], %s237
          %s239 = sshll.u32 [#allocation6], 4
          %s240 = int_to_ptr.vmem [resolvable:$true] %s239
          %245 = dma.hbm_to_vmem [thread:$0]  %s3, 1024, %s240, [#allocation5], 64, 64, 4
        $region24: #{tpu_custom_call.1} parent=11 // pred_fallthru
          _
        // Predicated region
        $region25: #{tpu_custom_call.1} parent=11 // pred_check
          %p246 = pneg %p126
        $region26: #{tpu_custom_call.1} parent=11 // pred_check_branch
          %248 = sbr.rel (%p246) target = $region28
        $region27: #{tpu_custom_call.1} parent=11 // pred_region
          %s250 = ssub.s32 16, 16
          %251 = vsyncadd [#allocation8], %s250
          %s253 = sshll.u32 [#allocation7], 4
          %s254 = int_to_ptr.vmem [resolvable:$true] %s253
          %256 = dma.hbm_to_vmem [thread:$0]  %s4, 16, %s254, [#allocation8]
        $region28: #{tpu_custom_call.1} parent=11 // pred_fallthru
          _
        // Predicated region
        $region29: #{tpu_custom_call.1} parent=11 // pred_check
          %p257 = pneg %p147
        $region30: #{tpu_custom_call.1} parent=11 // pred_check_branch
          %259 = sbr.rel (%p257) target = $region32
        $region31: #{tpu_custom_call.1} parent=11 // pred_region
          _
        $region32: #{tpu_custom_call.1} parent=11 // pred_fallthru
          _
        // Predicated region
        $region33: #{tpu_custom_call.1} parent=11 // pred_check
          %p260 = pneg %p168
        $region34: #{tpu_custom_call.1} parent=11 // pred_check_branch
          %262 = sbr.rel (%p260) target = $region36
        $region35: #{tpu_custom_call.1} parent=11 // pred_region
          %s264 = ssub.s32 48, 48
          %265 = vsyncadd [#allocation8], %s264
          %s267 = sshll.u32 [#allocation9], 4
          %s268 = int_to_ptr.vmem [resolvable:$true] %s267
          %270 = dma.hbm_to_vmem [thread:$0]  %s6, 48, %s268, [#allocation8]
        $region36: #{tpu_custom_call.1} parent=11 // pred_fallthru
          _
      $region12: #{tpu_custom_call.1} parent=5 // pred_fallthru
        _
      %p271 = scmp.lt.s32.totalorder %s16, 2
      // Predicated region
      $region37: #{tpu_custom_call.1} parent=5 // pred_check
        %p272 = pneg %p271
      $region38: #{tpu_custom_call.1} parent=5 // pred_check_branch
        %274 = sbr.rel (%p272) target = $region40
      $region39: #{tpu_custom_call.1} parent=5 // pred_region
        // Predicated region
        $region41: #{tpu_custom_call.1} parent=39 // pred_check
          %p275 = pneg %p36
        $region42: #{tpu_custom_call.1} parent=39 // pred_check_branch
          %277 = sbr.rel (%p275) target = $region44
        $region43: #{tpu_custom_call.1} parent=39 // pred_region
          %s278 = smul.u32 64, %s16
          %p279 = scmp.lt.s32.totalorder %s278, 127
          %s280 = scalar_select %p279, %s278, 127
          %s281 = smul.addr %s280, 8
          %s282 = scalar_lea.vmem %s0, %s281
          %s283 = smul.u32 64, %s16
        $region44: #{tpu_custom_call.1} parent=39 // pred_fallthru
          _
      $region40: #{tpu_custom_call.1} parent=5 // pred_fallthru
        _
      %p284 = scmp.le.s32.totalorder 1, %s16
      %p285 = scmp.lt.s32.totalorder %s16, 3
      %p286 = pnand %p284, %p285
      %p287 = pneg %p286
      // Predicated region
      $region45: #{tpu_custom_call.1} parent=5 // pred_check
        _
      $region46: #{tpu_custom_call.1} parent=5 // pred_check_branch
        %289 = sbr.rel (%p286) target = $region48
      $region47: #{tpu_custom_call.1} parent=5 // pred_region
        %s290 = ssub.s32 %s16, 1
        // Predicated region
        $region49: #{tpu_custom_call.1} parent=47 // pred_check
          %p291 = pneg %p63
        $region50: #{tpu_custom_call.1} parent=47 // pred_check_branch
          %293 = sbr.rel (%p291) target = $region52
        $region51: #{tpu_custom_call.1} parent=47 // pred_region
          %294 = dma.done [#allocation3], 256
        $region52: #{tpu_custom_call.1} parent=47 // pred_fallthru
          _
        // Predicated region
        $region53: #{tpu_custom_call.1} parent=47 // pred_check
          %p295 = pneg %p84
        $region54: #{tpu_custom_call.1} parent=47 // pred_check_branch
          %297 = sbr.rel (%p295) target = $region56
        $region55: #{tpu_custom_call.1} parent=47 // pred_region
          %298 = dma.done [#allocation5], 16
        $region56: #{tpu_custom_call.1} parent=47 // pred_fallthru
          _
        // Predicated region
        $region57: #{tpu_custom_call.1} parent=47 // pred_check
          %p299 = pneg %p105
        $region58: #{tpu_custom_call.1} parent=47 // pred_check_branch
          %301 = sbr.rel (%p299) target = $region60
        $region59: #{tpu_custom_call.1} parent=47 // pred_region
          %302 = dma.done [#allocation5], 1024
        $region60: #{tpu_custom_call.1} parent=47 // pred_fallthru
          _
        // Predicated region
        $region61: #{tpu_custom_call.1} parent=47 // pred_check
          %p303 = pneg %p126
        $region62: #{tpu_custom_call.1} parent=47 // pred_check_branch
          %305 = sbr.rel (%p303) target = $region64
        $region63: #{tpu_custom_call.1} parent=47 // pred_region
          %306 = dma.done [#allocation8], 16
        $region64: #{tpu_custom_call.1} parent=47 // pred_fallthru
          _
        // Predicated region
        $region65: #{tpu_custom_call.1} parent=47 // pred_check
          %p307 = pneg %p168
        $region66: #{tpu_custom_call.1} parent=47 // pred_check_branch
          %309 = sbr.rel (%p307) target = $region68
        $region67: #{tpu_custom_call.1} parent=47 // pred_region
          %310 = dma.done [#allocation8], 48
        $region68: #{tpu_custom_call.1} parent=47 // pred_fallthru
          _
        %s311 = smul.u32 64, %s21
        %p312 = scmp.lt.s32.totalorder %s311, 127
        %s313 = scalar_select %p312, %s311, 127
        %s314 = smul.addr %s313, 8
        %s315 = scalar_lea.vmem %s0, %s314
        %p316 = pneg %p42
        %p317 = pneg %p39
        %p318 = pneg %p63
        %p319 = pneg %p60
        %p320 = pneg %p84
        %p321 = pneg %p81
        %p322 = pneg %p105
        %p323 = pneg %p102
        %p324 = pneg %p126
        %p325 = pneg %p123
        %p326 = pneg %p147
        %p327 = pneg %p144
        %p328 = pneg %p168
        %p329 = pneg %p165
        %p330 = pneg %p194
        %p331 = pneg %p191
        %s332 = smul.u32 64, %s21
        %p333 = scmp.lt.s32.totalorder %s332, 127
        %s334 = scalar_select %p333, %s332, 127
        %s335 = smul.addr %s334, 3
        %s336 = smul.addr %s335, 8
        %s337 = scalar_lea.vmem %s7, %s336
        %s338 = smul.u32 64, %s21
        %p339 = scmp.lt.s32.totalorder %s338, 127
        %s340 = scalar_select %p339, %s338, 127
        %s341 = smul.addr %s340, 8
        %s342 = scalar_lea.vmem %s0, %s341
        %s343 = smul.u32 64, %s21
        %s344 = smul.u32 64, %s21
        %p345 = scmp.lt.s32.totalorder %s344, 127
        %s346 = scalar_select %p345, %s344, 127
        %s347 = smul.addr %s346, 3
        %s348 = smul.addr %s347, 8
        %s349 = scalar_lea.vmem %s7, %s348
        %s350 = smul.u32 64, %s21
        %v352 = vld [vmem:[%s342] sm:$0xff]
        %v353 = vld [vmem:[%s342 + $0x8] sm:$0xff]
        %v354 = vld [vmem:[%s342 + $0x10] sm:$0xff]
        %v355 = vld [vmem:[%s342 + $0x18] sm:$0xff]
        %v356 = vld [vmem:[%s342 + $0x20] sm:$0xff]
        %v357 = vld [vmem:[%s342 + $0x28] sm:$0xff]
        %v358 = vld [vmem:[%s342 + $0x30] sm:$0xff]
        %v359 = vld [vmem:[%s342 + $0x38] sm:$0xff]
        %v360 = vld [vmem:[%s342 + $0x40] sm:$0xff]
        %v361 = vld [vmem:[%s342 + $0x48] sm:$0xff]
        %v362 = vld [vmem:[%s342 + $0x50] sm:$0xff]
        %v363 = vld [vmem:[%s342 + $0x58] sm:$0xff]
        %v364 = vld [vmem:[%s342 + $0x60] sm:$0xff]
        %v365 = vld [vmem:[%s342 + $0x68] sm:$0xff]
        %v366 = vld [vmem:[%s342 + $0x70] sm:$0xff]
        %v367 = vld [vmem:[%s342 + $0x78] sm:$0xff]
        %v368 = vld [vmem:[%s342 + $0x80] sm:$0xff]
        %v369 = vld [vmem:[%s342 + $0x88] sm:$0xff]
        %v370 = vld [vmem:[%s342 + $0x90] sm:$0xff]
        %v371 = vld [vmem:[%s342 + $0x98] sm:$0xff]
        %v372 = vld [vmem:[%s342 + $0xa0] sm:$0xff]
        %v373 = vld [vmem:[%s342 + $0xa8] sm:$0xff]
        %v374 = vld [vmem:[%s342 + $0xb0] sm:$0xff]
        %v375 = vld [vmem:[%s342 + $0xb8] sm:$0xff]
        %v376 = vld [vmem:[%s342 + $0xc0] sm:$0xff]
        %v377 = vld [vmem:[%s342 + $0xc8] sm:$0xff]
        %v378 = vld [vmem:[%s342 + $0xd0] sm:$0xff]
        %v379 = vld [vmem:[%s342 + $0xd8] sm:$0xff]
        %v380 = vld [vmem:[%s342 + $0xe0] sm:$0xff]
        %v381 = vld [vmem:[%s342 + $0xe8] sm:$0xff]
        %v382 = vld [vmem:[%s342 + $0xf0] sm:$0xff]
        %v383 = vld [vmem:[%s342 + $0xf8] sm:$0xff]
        %v384 = vld [vmem:[%s342 + $0x100] sm:$0xff]
        %v385 = vld [vmem:[%s342 + $0x108] sm:$0xff]
        %v386 = vld [vmem:[%s342 + $0x110] sm:$0xff]
        %v387 = vld [vmem:[%s342 + $0x118] sm:$0xff]
        %v388 = vld [vmem:[%s342 + $0x120] sm:$0xff]
        %v389 = vld [vmem:[%s342 + $0x128] sm:$0xff]
        %v390 = vld [vmem:[%s342 + $0x130] sm:$0xff]
        %v391 = vld [vmem:[%s342 + $0x138] sm:$0xff]
        %v392 = vld [vmem:[%s342 + $0x140] sm:$0xff]
        %v393 = vld [vmem:[%s342 + $0x148] sm:$0xff]
        %v394 = vld [vmem:[%s342 + $0x150] sm:$0xff]
        %v395 = vld [vmem:[%s342 + $0x158] sm:$0xff]
        %v396 = vld [vmem:[%s342 + $0x160] sm:$0xff]
        %v397 = vld [vmem:[%s342 + $0x168] sm:$0xff]
        %v398 = vld [vmem:[%s342 + $0x170] sm:$0xff]
        %v399 = vld [vmem:[%s342 + $0x178] sm:$0xff]
        %v400 = vld [vmem:[%s342 + $0x180] sm:$0xff]
        %v401 = vld [vmem:[%s342 + $0x188] sm:$0xff]
        %v402 = vld [vmem:[%s342 + $0x190] sm:$0xff]
        %v403 = vld [vmem:[%s342 + $0x198] sm:$0xff]
        %v404 = vld [vmem:[%s342 + $0x1a0] sm:$0xff]
        %v405 = vld [vmem:[%s342 + $0x1a8] sm:$0xff]
        %v406 = vld [vmem:[%s342 + $0x1b0] sm:$0xff]
        %v407 = vld [vmem:[%s342 + $0x1b8] sm:$0xff]
        %v408 = vld [vmem:[%s342 + $0x1c0] sm:$0xff]
        %v409 = vld [vmem:[%s342 + $0x1c8] sm:$0xff]
        %v410 = vld [vmem:[%s342 + $0x1d0] sm:$0xff]
        %v411 = vld [vmem:[%s342 + $0x1d8] sm:$0xff]
        %v412 = vld [vmem:[%s342 + $0x1e0] sm:$0xff]
        %v413 = vld [vmem:[%s342 + $0x1e8] sm:$0xff]
        %v414 = vld [vmem:[%s342 + $0x1f0] sm:$0xff]
        %v415 = vld [vmem:[%s342 + $0x1f8] sm:$0xff]
        %v416 = vpack.c.bf16 %v353, %v352
        %v417 = vpack.c.bf16 %v355, %v354
        %v418 = vpack.c.bf16 %v357, %v356
        %v419 = vpack.c.bf16 %v359, %v358
        %v420 = vpack.c.bf16 %v361, %v360
        %v421 = vpack.c.bf16 %v363, %v362
        %v422 = vpack.c.bf16 %v365, %v364
        %v423 = vpack.c.bf16 %v367, %v366
        %v424 = vpack.c.bf16 %v369, %v368
        %v425 = vpack.c.bf16 %v371, %v370
        %v426 = vpack.c.bf16 %v373, %v372
        %v427 = vpack.c.bf16 %v375, %v374
        %v428 = vpack.c.bf16 %v377, %v376
        %v429 = vpack.c.bf16 %v379, %v378
        %v430 = vpack.c.bf16 %v381, %v380
        %v431 = vpack.c.bf16 %v383, %v382
        %v432 = vpack.c.bf16 %v385, %v384
        %v433 = vpack.c.bf16 %v387, %v386
        %v434 = vpack.c.bf16 %v389, %v388
        %v435 = vpack.c.bf16 %v391, %v390
        %v436 = vpack.c.bf16 %v393, %v392
        %v437 = vpack.c.bf16 %v395, %v394
        %v438 = vpack.c.bf16 %v397, %v396
        %v439 = vpack.c.bf16 %v399, %v398
        %v440 = vpack.c.bf16 %v401, %v400
        %v441 = vpack.c.bf16 %v403, %v402
        %v442 = vpack.c.bf16 %v405, %v404
        %v443 = vpack.c.bf16 %v407, %v406
        %v444 = vpack.c.bf16 %v409, %v408
        %v445 = vpack.c.bf16 %v411, %v410
        %v446 = vpack.c.bf16 %v413, %v412
        %v447 = vpack.c.bf16 %v415, %v414
        %v448 = vld [vmem:[#allocation2] sm:$0xf]
        %v449 = vld [vmem:[#allocation2 + $0x4] sm:$0xf]
        %v450 = vld [vmem:[#allocation2 + $0x8] sm:$0xf]
        %v451 = vld [vmem:[#allocation2 + $0xc] sm:$0xf]
        %v452 = vld [vmem:[#allocation4] sm:$0x1]
        %v454 = vlaneseq
        %v455 = vshrl.u32 %v454, 7
        %v456 = vsub.s32 0, %v455
        %v457 = vrot.slane %v452, %v456
        %v463 = vunpack.c.l.b16 %v448
        %v464 = vunpack.c.l.b16 %v449
        %v465 = vunpack.c.l.b16 %v450
        %v466 = vunpack.c.l.b16 %v451
        %v467 = vpack.c.b16 %v464, %v463
        %v468 = vpack.c.b16 %v466, %v465
        %vm471 = vcmask 261120
        %v473 = vsel %vm471, %v416, 0
        %v476 = vsel %vm471, %v417, 0
        %v479 = vsel %vm471, %v418, 0
        %v482 = vsel %vm471, %v419, 0
        %v485 = vsel %vm471, %v420, 0
        %v488 = vsel %vm471, %v421, 0
        %v491 = vsel %vm471, %v422, 0
        %v494 = vsel %vm471, %v423, 0
        %v497 = vsel %vm471, %v424, 0
        %v500 = vsel %vm471, %v425, 0
        %v503 = vsel %vm471, %v426, 0
        %v506 = vsel %vm471, %v427, 0
        %v509 = vsel %vm471, %v428, 0
        %v512 = vsel %vm471, %v429, 0
        %v515 = vsel %vm471, %v430, 0
        %v518 = vsel %vm471, %v431, 0
        %v521 = vsel %vm471, %v432, 0
        %v524 = vsel %vm471, %v433, 0
        %v527 = vsel %vm471, %v434, 0
        %v530 = vsel %vm471, %v435, 0
        %v533 = vsel %vm471, %v436, 0
        %v536 = vsel %vm471, %v437, 0
        %v539 = vsel %vm471, %v438, 0
        %v542 = vsel %vm471, %v439, 0
        %v545 = vsel %vm471, %v440, 0
        %v548 = vsel %vm471, %v441, 0
        %v551 = vsel %vm471, %v442, 0
        %v554 = vsel %vm471, %v443, 0
        %v557 = vsel %vm471, %v444, 0
        %v560 = vsel %vm471, %v445, 0
        %v563 = vsel %vm471, %v446, 0
        %v566 = vsel %vm471, %v447, 0
        %568 = vmatprep.subr.bf16.mxu0 0
        %569 = vmatpush1.bf16.msra.mxu0 %v467
        %570 = vmatprep.subr.bf16.mxu0 0
        %571 = vmatpush1.bf16.msra.mxu0 %v468
        %572 = vmatprep.subr.bf16.mxu0 0
        %573 = vmatpush1.bf16.msra.mxu0 0
        %574 = vmatprep.subr.bf16.mxu0 0
        %575 = vmatpush1.bf16.msra.mxu0 0
        %576 = vmatprep.subr.bf16.mxu0 0
        %577 = vmatpush1.bf16.msra.mxu0 0
        %578 = vmatprep.subr.bf16.mxu0 0
        %579 = vmatpush1.bf16.msra.mxu0 0
        %580 = vmatprep.subr.bf16.mxu0 0
        %581 = vmatpush1.bf16.msra.mxu0 0
        %582 = vmatprep.subr.bf16.mxu0 0
        %583 = vmatpush1.bf16.msra.mxu0 0
        %584 = vmatprep.subr.bf16.mxu0 0
        %585 = vmatpush1.bf16.msra.mxu0 0
        %586 = vmatprep.subr.bf16.mxu0 0
        %587 = vmatpush1.bf16.msra.mxu0 0
        %588 = vmatprep.subr.bf16.mxu0 0
        %589 = vmatpush1.bf16.msra.mxu0 0
        %590 = vmatprep.subr.bf16.mxu0 0
        %591 = vmatpush1.bf16.msra.mxu0 0
        %592 = vmatprep.subr.bf16.mxu0 0
        %593 = vmatpush1.bf16.msra.mxu0 0
        %594 = vmatprep.subr.bf16.mxu0 0
        %595 = vmatpush1.bf16.msra.mxu0 0
        %596 = vmatprep.subr.bf16.mxu0 0
        %597 = vmatpush1.bf16.msra.mxu0 0
        %598 = vmatprep.subr.bf16.mxu0 0
        %599 = vmatpush1.bf16.msra.mxu0 0
        %600 = vmatprep.mubr.bf16.mxu0 0
        %601 = vmatmul.mubr.bf16.gmra.mrb[0].mxu0 %v473
        %v602 = vpop.f32.mrb[0].mxu0
        %v603 = vadd.f32 %v457, %v602
        %v604 = vpop.f32.mrb[0].mxu0
        %v605 = vpop.f32.mrb[0].mxu0
        %v606 = vadd.f32 %v457, %v605
        %v607 = vpop.f32.mrb[0].mxu0
        %608 = vmatprep.mubr.bf16.mxu0 0
        %609 = vmatmul.mubr.bf16.gmra.mrb[0].mxu0 %v476
        %v610 = vpop.f32.mrb[0].mxu0
        %v611 = vadd.f32 %v457, %v610
        %v612 = vpop.f32.mrb[0].mxu0
        %v613 = vpop.f32.mrb[0].mxu0
        %v614 = vadd.f32 %v457, %v613
        %v615 = vpop.f32.mrb[0].mxu0
        %616 = vmatprep.mubr.bf16.mxu0 0
        %617 = vmatmul.mubr.bf16.gmra.mrb[0].mxu0 %v479
        %v618 = vpop.f32.mrb[0].mxu0
        %v619 = vadd.f32 %v457, %v618
        %v620 = vpop.f32.mrb[0].mxu0
        %v621 = vpop.f32.mrb[0].mxu0
        %v622 = vadd.f32 %v457, %v621
        %v623 = vpop.f32.mrb[0].mxu0
        %624 = vmatprep.mubr.bf16.mxu0 0
        %625 = vmatmul.mubr.bf16.gmra.mrb[0].mxu0 %v482
        %v626 = vpop.f32.mrb[0].mxu0
        %v627 = vadd.f32 %v457, %v626
        %v628 = vpop.f32.mrb[0].mxu0
        %v629 = vpop.f32.mrb[0].mxu0
        %v630 = vadd.f32 %v457, %v629
        %v631 = vpop.f32.mrb[0].mxu0
        %632 = vmatprep.mubr.bf16.mxu0 0
        %633 = vmatmul.mubr.bf16.gmra.mrb[0].mxu0 %v485
        %v634 = vpop.f32.mrb[0].mxu0
        %v635 = vadd.f32 %v457, %v634
        %v636 = vpop.f32.mrb[0].mxu0
        %v637 = vpop.f32.mrb[0].mxu0
        %v638 = vadd.f32 %v457, %v637
        %v639 = vpop.f32.mrb[0].mxu0
        %640 = vmatprep.mubr.bf16.mxu0 0
        %641 = vmatmul.mubr.bf16.gmra.mrb[0].mxu0 %v488
        %v642 = vpop.f32.mrb[0].mxu0
        %v643 = vadd.f32 %v457, %v642
        %v644 = vpop.f32.mrb[0].mxu0
        %v645 = vpop.f32.mrb[0].mxu0
        %v646 = vadd.f32 %v457, %v645
        %v647 = vpop.f32.mrb[0].mxu0
        %648 = vmatprep.mubr.bf16.mxu0 0
        %649 = vmatmul.mubr.bf16.gmra.mrb[0].mxu0 %v491
        %v650 = vpop.f32.mrb[0].mxu0
        %v651 = vadd.f32 %v457, %v650
        %v652 = vpop.f32.mrb[0].mxu0
        %v653 = vpop.f32.mrb[0].mxu0
        %v654 = vadd.f32 %v457, %v653
        %v655 = vpop.f32.mrb[0].mxu0
        %656 = vmatprep.mubr.bf16.mxu0 0
        %657 = vmatmul.mubr.bf16.gmra.mrb[0].mxu0 %v494
        %v658 = vpop.f32.mrb[0].mxu0
        %v659 = vadd.f32 %v457, %v658
        %v660 = vpop.f32.mrb[0].mxu0
        %v661 = vpop.f32.mrb[0].mxu0
        %v662 = vadd.f32 %v457, %v661
        %v663 = vpop.f32.mrb[0].mxu0
        %664 = vmatprep.mubr.bf16.mxu0 0
        %665 = vmatmul.mubr.bf16.gmra.mrb[0].mxu0 %v497
        %v666 = vpop.f32.mrb[0].mxu0
        %v667 = vadd.f32 %v457, %v666
        %v668 = vpop.f32.mrb[0].mxu0
        %v669 = vpop.f32.mrb[0].mxu0
        %v670 = vadd.f32 %v457, %v669
        %v671 = vpop.f32.mrb[0].mxu0
        %672 = vmatprep.mubr.bf16.mxu0 0
        %673 = vmatmul.mubr.bf16.gmra.mrb[0].mxu0 %v500
        %v674 = vpop.f32.mrb[0].mxu0
        %v675 = vadd.f32 %v457, %v674
        %v676 = vpop.f32.mrb[0].mxu0
        %v677 = vpop.f32.mrb[0].mxu0
        %v678 = vadd.f32 %v457, %v677
        %v679 = vpop.f32.mrb[0].mxu0
        %680 = vmatprep.mubr.bf16.mxu0 0
        %681 = vmatmul.mubr.bf16.gmra.mrb[0].mxu0 %v503
        %v682 = vpop.f32.mrb[0].mxu0
        %v683 = vadd.f32 %v457, %v682
        %v684 = vpop.f32.mrb[0].mxu0
        %v685 = vpop.f32.mrb[0].mxu0
        %v686 = vadd.f32 %v457, %v685
        %v687 = vpop.f32.mrb[0].mxu0
        %688 = vmatprep.mubr.bf16.mxu0 0
        %689 = vmatmul.mubr.bf16.gmra.mrb[0].mxu0 %v506
        %v690 = vpop.f32.mrb[0].mxu0
        %v691 = vadd.f32 %v457, %v690
        %v692 = vpop.f32.mrb[0].mxu0
        %v693 = vpop.f32.mrb[0].mxu0
        %v694 = vadd.f32 %v457, %v693
        %v695 = vpop.f32.mrb[0].mxu0
        %696 = vmatprep.mubr.bf16.mxu0 0
        %697 = vmatmul.mubr.bf16.gmra.mrb[0].mxu0 %v509
        %v698 = vpop.f32.mrb[0].mxu0
        %v699 = vadd.f32 %v457, %v698
        %v700 = vpop.f32.mrb[0].mxu0
        %v701 = vpop.f32.mrb[0].mxu0
        %v702 = vadd.f32 %v457, %v701
        %v703 = vpop.f32.mrb[0].mxu0
        %704 = vmatprep.mubr.bf16.mxu0 0
        %705 = vmatmul.mubr.bf16.gmra.mrb[0].mxu0 %v512
        %v706 = vpop.f32.mrb[0].mxu0
        %v707 = vadd.f32 %v457, %v706
        %v708 = vpop.f32.mrb[0].mxu0
        %v709 = vpop.f32.mrb[0].mxu0
        %v710 = vadd.f32 %v457, %v709
        %v711 = vpop.f32.mrb[0].mxu0
        %712 = vmatprep.mubr.bf16.mxu0 0
        %713 = vmatmul.mubr.bf16.gmra.mrb[0].mxu0 %v515
        %v714 = vpop.f32.mrb[0].mxu0
        %v715 = vadd.f32 %v457, %v714
        %v716 = vpop.f32.mrb[0].mxu0
        %v717 = vpop.f32.mrb[0].mxu0
        %v718 = vadd.f32 %v457, %v717
        %v719 = vpop.f32.mrb[0].mxu0
        %720 = vmatprep.mubr.bf16.mxu0 0
        %721 = vmatmul.mubr.bf16.gmra.mrb[0].mxu0 %v518
        %v722 = vpop.f32.mrb[0].mxu0
        %v723 = vadd.f32 %v457, %v722
        %v724 = vpop.f32.mrb[0].mxu0
        %v725 = vpop.f32.mrb[0].mxu0
        %v726 = vadd.f32 %v457, %v725
        %v727 = vpop.f32.mrb[0].mxu0
        %728 = vmatprep.mubr.bf16.mxu0 0
        %729 = vmatmul.mubr.bf16.gmra.mrb[0].mxu0 %v521
        %v730 = vpop.f32.mrb[0].mxu0
        %v731 = vadd.f32 %v457, %v730
        %v732 = vpop.f32.mrb[0].mxu0
        %v733 = vpop.f32.mrb[0].mxu0
        %v734 = vadd.f32 %v457, %v733
        %v735 = vpop.f32.mrb[0].mxu0
        %736 = vmatprep.mubr.bf16.mxu0 0
        %737 = vmatmul.mubr.bf16.gmra.mrb[0].mxu0 %v524
        %v738 = vpop.f32.mrb[0].mxu0
        %v739 = vadd.f32 %v457, %v738
        %v740 = vpop.f32.mrb[0].mxu0
        %v741 = vpop.f32.mrb[0].mxu0
        %v742 = vadd.f32 %v457, %v741
        %v743 = vpop.f32.mrb[0].mxu0
        %744 = vmatprep.mubr.bf16.mxu0 0
        %745 = vmatmul.mubr.bf16.gmra.mrb[0].mxu0 %v527
        %v746 = vpop.f32.mrb[0].mxu0
        %v747 = vadd.f32 %v457, %v746
        %v748 = vpop.f32.mrb[0].mxu0
        %v749 = vpop.f32.mrb[0].mxu0
        %v750 = vadd.f32 %v457, %v749
        %v751 = vpop.f32.mrb[0].mxu0
        %752 = vmatprep.mubr.bf16.mxu0 0
        %753 = vmatmul.mubr.bf16.gmra.mrb[0].mxu0 %v530
        %v754 = vpop.f32.mrb[0].mxu0
        %v755 = vadd.f32 %v457, %v754
        %v756 = vpop.f32.mrb[0].mxu0
        %v757 = vpop.f32.mrb[0].mxu0
        %v758 = vadd.f32 %v457, %v757
        %v759 = vpop.f32.mrb[0].mxu0
        %760 = vmatprep.mubr.bf16.mxu0 0
        %761 = vmatmul.mubr.bf16.gmra.mrb[0].mxu0 %v533
        %v762 = vpop.f32.mrb[0].mxu0
        %v763 = vadd.f32 %v457, %v762
        %v764 = vpop.f32.mrb[0].mxu0
        %v765 = vpop.f32.mrb[0].mxu0
        %v766 = vadd.f32 %v457, %v765
        %v767 = vpop.f32.mrb[0].mxu0
        %768 = vmatprep.mubr.bf16.mxu0 0
        %769 = vmatmul.mubr.bf16.gmra.mrb[0].mxu0 %v536
        %v770 = vpop.f32.mrb[0].mxu0
        %v771 = vadd.f32 %v457, %v770
        %v772 = vpop.f32.mrb[0].mxu0
        %v773 = vpop.f32.mrb[0].mxu0
        %v774 = vadd.f32 %v457, %v773
        %v775 = vpop.f32.mrb[0].mxu0
        %776 = vmatprep.mubr.bf16.mxu0 0
        %777 = vmatmul.mubr.bf16.gmra.mrb[0].mxu0 %v539
        %v778 = vpop.f32.mrb[0].mxu0
        %v779 = vadd.f32 %v457, %v778
        %v780 = vpop.f32.mrb[0].mxu0
        %v781 = vpop.f32.mrb[0].mxu0
        %v782 = vadd.f32 %v457, %v781
        %v783 = vpop.f32.mrb[0].mxu0
        %784 = vmatprep.mubr.bf16.mxu0 0
        %785 = vmatmul.mubr.bf16.gmra.mrb[0].mxu0 %v542
        %v786 = vpop.f32.mrb[0].mxu0
        %v787 = vadd.f32 %v457, %v786
        %v788 = vpop.f32.mrb[0].mxu0
        %v789 = vpop.f32.mrb[0].mxu0
        %v790 = vadd.f32 %v457, %v789
        %v791 = vpop.f32.mrb[0].mxu0
        %792 = vmatprep.mubr.bf16.mxu0 0
        %793 = vmatmul.mubr.bf16.gmra.mrb[0].mxu0 %v545
        %v794 = vpop.f32.mrb[0].mxu0
        %v795 = vadd.f32 %v457, %v794
        %v796 = vpop.f32.mrb[0].mxu0
        %v797 = vpop.f32.mrb[0].mxu0
        %v798 = vadd.f32 %v457, %v797
        %v799 = vpop.f32.mrb[0].mxu0
        %800 = vmatprep.mubr.bf16.mxu0 0
        %801 = vmatmul.mubr.bf16.gmra.mrb[0].mxu0 %v548
        %v802 = vpop.f32.mrb[0].mxu0
        %v803 = vadd.f32 %v457, %v802
        %v804 = vpop.f32.mrb[0].mxu0
        %v805 = vpop.f32.mrb[0].mxu0
        %v806 = vadd.f32 %v457, %v805
        %v807 = vpop.f32.mrb[0].mxu0
        %808 = vmatprep.mubr.bf16.mxu0 0
        %809 = vmatmul.mubr.bf16.gmra.mrb[0].mxu0 %v551
        %v810 = vpop.f32.mrb[0].mxu0
        %v811 = vadd.f32 %v457, %v810
        %v812 = vpop.f32.mrb[0].mxu0
        %v813 = vpop.f32.mrb[0].mxu0
        %v814 = vadd.f32 %v457, %v813
        %v815 = vpop.f32.mrb[0].mxu0
        %816 = vmatprep.mubr.bf16.mxu0 0
        %817 = vmatmul.mubr.bf16.gmra.mrb[0].mxu0 %v554
        %v818 = vpop.f32.mrb[0].mxu0
        %v819 = vadd.f32 %v457, %v818
        %v820 = vpop.f32.mrb[0].mxu0
        %v821 = vpop.f32.mrb[0].mxu0
        %v822 = vadd.f32 %v457, %v821
        %v823 = vpop.f32.mrb[0].mxu0
        %824 = vmatprep.mubr.bf16.mxu0 0
        %825 = vmatmul.mubr.bf16.gmra.mrb[0].mxu0 %v557
        %v826 = vpop.f32.mrb[0].mxu0
        %v827 = vadd.f32 %v457, %v826
        %v828 = vpop.f32.mrb[0].mxu0
        %v829 = vpop.f32.mrb[0].mxu0
        %v830 = vadd.f32 %v457, %v829
        %v831 = vpop.f32.mrb[0].mxu0
        %832 = vmatprep.mubr.bf16.mxu0 0
        %833 = vmatmul.mubr.bf16.gmra.mrb[0].mxu0 %v560
        %v834 = vpop.f32.mrb[0].mxu0
        %v835 = vadd.f32 %v457, %v834
        %v836 = vpop.f32.mrb[0].mxu0
        %v837 = vpop.f32.mrb[0].mxu0
        %v838 = vadd.f32 %v457, %v837
        %v839 = vpop.f32.mrb[0].mxu0
        %840 = vmatprep.mubr.bf16.mxu0 0
        %841 = vmatmul.mubr.bf16.gmra.mrb[0].mxu0 %v563
        %v842 = vpop.f32.mrb[0].mxu0
        %v843 = vadd.f32 %v457, %v842
        %v844 = vpop.f32.mrb[0].mxu0
        %v845 = vpop.f32.mrb[0].mxu0
        %v846 = vadd.f32 %v457, %v845
        %v847 = vpop.f32.mrb[0].mxu0
        %848 = vmatprep.mubr.bf16.mxu0 0
        %849 = vmatmul.mubr.bf16.gmra.mrb[0].mxu0 %v566
        %v850 = vpop.f32.mrb[0].mxu0
        %v851 = vadd.f32 %v457, %v850
        %v852 = vpop.f32.mrb[0].mxu0
        %v853 = vpop.f32.mrb[0].mxu0
        %v854 = vadd.f32 %v457, %v853
        %v855 = vpop.f32.mrb[0].mxu0
        %856 = vdwg.mxu0
        %v857 = vmax.f32 %v603, 0.0
        %v858 = vmax.f32 %v606, 0.0
        %v859 = vmax.f32 %v611, 0.0
        %v860 = vmax.f32 %v614, 0.0
        %v861 = vmax.f32 %v619, 0.0
        %v862 = vmax.f32 %v622, 0.0
        %v863 = vmax.f32 %v627, 0.0
        %v864 = vmax.f32 %v630, 0.0
        %v865 = vmax.f32 %v635, 0.0
        %v866 = vmax.f32 %v638, 0.0
        %v867 = vmax.f32 %v643, 0.0
        %v868 = vmax.f32 %v646, 0.0
        %v869 = vmax.f32 %v651, 0.0
        %v870 = vmax.f32 %v654, 0.0
        %v871 = vmax.f32 %v659, 0.0
        %v872 = vmax.f32 %v662, 0.0
        %v873 = vmax.f32 %v667, 0.0
        %v874 = vmax.f32 %v670, 0.0
        %v875 = vmax.f32 %v675, 0.0
        %v876 = vmax.f32 %v678, 0.0
        %v877 = vmax.f32 %v683, 0.0
        %v878 = vmax.f32 %v686, 0.0
        %v879 = vmax.f32 %v691, 0.0
        %v880 = vmax.f32 %v694, 0.0
        %v881 = vmax.f32 %v699, 0.0
        %v882 = vmax.f32 %v702, 0.0
        %v883 = vmax.f32 %v707, 0.0
        %v884 = vmax.f32 %v710, 0.0
        %v885 = vmax.f32 %v715, 0.0
        %v886 = vmax.f32 %v718, 0.0
        %v887 = vmax.f32 %v723, 0.0
        %v888 = vmax.f32 %v726, 0.0
        %v889 = vmax.f32 %v731, 0.0
        %v890 = vmax.f32 %v734, 0.0
        %v891 = vmax.f32 %v739, 0.0
        %v892 = vmax.f32 %v742, 0.0
        %v893 = vmax.f32 %v747, 0.0
        %v894 = vmax.f32 %v750, 0.0
        %v895 = vmax.f32 %v755, 0.0
        %v896 = vmax.f32 %v758, 0.0
        %v897 = vmax.f32 %v763, 0.0
        %v898 = vmax.f32 %v766, 0.0
        %v899 = vmax.f32 %v771, 0.0
        %v900 = vmax.f32 %v774, 0.0
        %v901 = vmax.f32 %v779, 0.0
        %v902 = vmax.f32 %v782, 0.0
        %v903 = vmax.f32 %v787, 0.0
        %v904 = vmax.f32 %v790, 0.0
        %v905 = vmax.f32 %v795, 0.0
        %v906 = vmax.f32 %v798, 0.0
        %v907 = vmax.f32 %v803, 0.0
        %v908 = vmax.f32 %v806, 0.0
        %v909 = vmax.f32 %v811, 0.0
        %v910 = vmax.f32 %v814, 0.0
        %v911 = vmax.f32 %v819, 0.0
        %v912 = vmax.f32 %v822, 0.0
        %v913 = vmax.f32 %v827, 0.0
        %v914 = vmax.f32 %v830, 0.0
        %v915 = vmax.f32 %v835, 0.0
        %v916 = vmax.f32 %v838, 0.0
        %v917 = vmax.f32 %v843, 0.0
        %v918 = vmax.f32 %v846, 0.0
        %v919 = vmax.f32 %v851, 0.0
        %v920 = vmax.f32 %v854, 0.0
        %v921 = vpack.c.bf16 %v858, %v857
        %v922 = vpack.c.bf16 %v860, %v859
        %v923 = vpack.c.bf16 %v862, %v861
        %v924 = vpack.c.bf16 %v864, %v863
        %v925 = vpack.c.bf16 %v866, %v865
        %v926 = vpack.c.bf16 %v868, %v867
        %v927 = vpack.c.bf16 %v870, %v869
        %v928 = vpack.c.bf16 %v872, %v871
        %v929 = vpack.c.bf16 %v874, %v873
        %v930 = vpack.c.bf16 %v876, %v875
        %v931 = vpack.c.bf16 %v878, %v877
        %v932 = vpack.c.bf16 %v880, %v879
        %v933 = vpack.c.bf16 %v882, %v881
        %v934 = vpack.c.bf16 %v884, %v883
        %v935 = vpack.c.bf16 %v886, %v885
        %v936 = vpack.c.bf16 %v888, %v887
        %v937 = vpack.c.bf16 %v890, %v889
        %v938 = vpack.c.bf16 %v892, %v891
        %v939 = vpack.c.bf16 %v894, %v893
        %v940 = vpack.c.bf16 %v896, %v895
        %v941 = vpack.c.bf16 %v898, %v897
        %v942 = vpack.c.bf16 %v900, %v899
        %v943 = vpack.c.bf16 %v902, %v901
        %v944 = vpack.c.bf16 %v904, %v903
        %v945 = vpack.c.bf16 %v906, %v905
        %v946 = vpack.c.bf16 %v908, %v907
        %v947 = vpack.c.bf16 %v910, %v909
        %v948 = vpack.c.bf16 %v912, %v911
        %v949 = vpack.c.bf16 %v914, %v913
        %v950 = vpack.c.bf16 %v916, %v915
        %v951 = vpack.c.bf16 %v918, %v917
        %v952 = vpack.c.bf16 %v920, %v919
        %v953 = vld [vmem:[#allocation6] sm:$0xf]
        %v954 = vld [vmem:[#allocation6 + $0x4] sm:$0xf]
        %v955 = vld [vmem:[#allocation6 + $0x8] sm:$0xf]
        %v956 = vld [vmem:[#allocation6 + $0xc] sm:$0xf]
        %v957 = vld [vmem:[#allocation6 + $0x10] sm:$0xf]
        %v958 = vld [vmem:[#allocation6 + $0x14] sm:$0xf]
        %v959 = vld [vmem:[#allocation6 + $0x18] sm:$0xf]
        %v960 = vld [vmem:[#allocation6 + $0x1c] sm:$0xf]
        %v961 = vld [vmem:[#allocation6 + $0x20] sm:$0xf]
        %v962 = vld [vmem:[#allocation6 + $0x24] sm:$0xf]
        %v963 = vld [vmem:[#allocation6 + $0x28] sm:$0xf]
        %v964 = vld [vmem:[#allocation6 + $0x2c] sm:$0xf]
        %v965 = vld [vmem:[#allocation6 + $0x30] sm:$0xf]
        %v966 = vld [vmem:[#allocation6 + $0x34] sm:$0xf]
        %v967 = vld [vmem:[#allocation6 + $0x38] sm:$0xf]
        %v968 = vld [vmem:[#allocation6 + $0x3c] sm:$0xf]
        %v969 = vld [vmem:[#allocation7] sm:$0x1]
        %v971 = vlaneseq
        %v972 = vshrl.u32 %v971, 7
        %v973 = vsub.s32 0, %v972
        %v974 = vrot.slane %v969, %v973
        %v992 = vunpack.c.l.b16 %v953
        %v993 = vunpack.c.l.b16 %v954
        %v994 = vunpack.c.l.b16 %v955
        %v995 = vunpack.c.l.b16 %v956
        %v996 = vunpack.c.l.b16 %v957
        %v997 = vunpack.c.l.b16 %v958
        %v998 = vunpack.c.l.b16 %v959
        %v999 = vunpack.c.l.b16 %v960
        %v1000 = vunpack.c.l.b16 %v961
        %v1001 = vunpack.c.l.b16 %v962
        %v1002 = vunpack.c.l.b16 %v963
        %v1003 = vunpack.c.l.b16 %v964
        %v1004 = vunpack.c.l.b16 %v965
        %v1005 = vunpack.c.l.b16 %v966
        %v1006 = vunpack.c.l.b16 %v967
        %v1007 = vunpack.c.l.b16 %v968
        %v1008 = vpack.c.b16 %v993, %v992
        %v1009 = vpack.c.b16 %v995, %v994
        %v1010 = vpack.c.b16 %v997, %v996
        %v1011 = vpack.c.b16 %v999, %v998
        %v1012 = vpack.c.b16 %v1001, %v1000
        %v1013 = vpack.c.b16 %v1003, %v1002
        %v1014 = vpack.c.b16 %v1005, %v1004
        %v1015 = vpack.c.b16 %v1007, %v1006
        %1024 = vmatprep.subr.bf16.mxu0 0
        %1025 = vmatpush1.bf16.msra.mxu0 %v1008
        %1026 = vmatprep.subr.bf16.mxu0 0
        %1027 = vmatpush1.bf16.msra.mxu0 %v1009
        %1028 = vmatprep.subr.bf16.mxu0 0
        %1029 = vmatpush1.bf16.msra.mxu0 %v1010
        %1030 = vmatprep.subr.bf16.mxu0 0
        %1031 = vmatpush1.bf16.msra.mxu0 %v1011
        %1032 = vmatprep.subr.bf16.mxu0 0
        %1033 = vmatpush1.bf16.msra.mxu0 %v1012
        %1034 = vmatprep.subr.bf16.mxu0 0
        %1035 = vmatpush1.bf16.msra.mxu0 %v1013
        %1036 = vmatprep.subr.bf16.mxu0 0
        %1037 = vmatpush1.bf16.msra.mxu0 %v1014
        %1038 = vmatprep.subr.bf16.mxu0 0
        %1039 = vmatpush1.bf16.msra.mxu0 %v1015
        %1040 = vmatprep.subr.bf16.mxu0 0
        %1041 = vmatpush1.bf16.msra.mxu0 0
        %1042 = vmatprep.subr.bf16.mxu0 0
        %1043 = vmatpush1.bf16.msra.mxu0 0
        %1044 = vmatprep.subr.bf16.mxu0 0
        %1045 = vmatpush1.bf16.msra.mxu0 0
        %1046 = vmatprep.subr.bf16.mxu0 0
        %1047 = vmatpush1.bf16.msra.mxu0 0
        %1048 = vmatprep.subr.bf16.mxu0 0
        %1049 = vmatpush1.bf16.msra.mxu0 0
        %1050 = vmatprep.subr.bf16.mxu0 0
        %1051 = vmatpush1.bf16.msra.mxu0 0
        %1052 = vmatprep.subr.bf16.mxu0 0
        %1053 = vmatpush1.bf16.msra.mxu0 0
        %1054 = vmatprep.subr.bf16.mxu0 0
        %1055 = vmatpush1.bf16.msra.mxu0 0
        %1056 = vmatprep.mubr.bf16.mxu0 0
        %1057 = vmatmul.mubr.bf16.gmra.mrb[0].mxu0 %v921
        %v1058 = vpop.f32.mrb[0].mxu0
        %v1059 = vadd.f32 %v974, %v1058
        %v1060 = vpop.f32.mrb[0].mxu0
        %v1061 = vpop.f32.mrb[0].mxu0
        %v1062 = vadd.f32 %v974, %v1061
        %v1063 = vpop.f32.mrb[0].mxu0
        %1064 = vmatprep.mubr.bf16.mxu0 0
        %1065 = vmatmul.mubr.bf16.gmra.mrb[0].mxu0 %v922
        %v1066 = vpop.f32.mrb[0].mxu0
        %v1067 = vadd.f32 %v974, %v1066
        %v1068 = vpop.f32.mrb[0].mxu0
        %v1069 = vpop.f32.mrb[0].mxu0
        %v1070 = vadd.f32 %v974, %v1069
        %v1071 = vpop.f32.mrb[0].mxu0
        %1072 = vmatprep.mubr.bf16.mxu0 0
        %1073 = vmatmul.mubr.bf16.gmra.mrb[0].mxu0 %v923
        %v1074 = vpop.f32.mrb[0].mxu0
        %v1075 = vadd.f32 %v974, %v1074
        %v1076 = vpop.f32.mrb[0].mxu0
        %v1077 = vpop.f32.mrb[0].mxu0
        %v1078 = vadd.f32 %v974, %v1077
        %v1079 = vpop.f32.mrb[0].mxu0
        %1080 = vmatprep.mubr.bf16.mxu0 0
        %1081 = vmatmul.mubr.bf16.gmra.mrb[0].mxu0 %v924
        %v1082 = vpop.f32.mrb[0].mxu0
        %v1083 = vadd.f32 %v974, %v1082
        %v1084 = vpop.f32.mrb[0].mxu0
        %v1085 = vpop.f32.mrb[0].mxu0
        %v1086 = vadd.f32 %v974, %v1085
        %v1087 = vpop.f32.mrb[0].mxu0
        %1088 = vmatprep.mubr.bf16.mxu0 0
        %1089 = vmatmul.mubr.bf16.gmra.mrb[0].mxu0 %v925
        %v1090 = vpop.f32.mrb[0].mxu0
        %v1091 = vadd.f32 %v974, %v1090
        %v1092 = vpop.f32.mrb[0].mxu0
        %v1093 = vpop.f32.mrb[0].mxu0
        %v1094 = vadd.f32 %v974, %v1093
        %v1095 = vpop.f32.mrb[0].mxu0
        %1096 = vmatprep.mubr.bf16.mxu0 0
        %1097 = vmatmul.mubr.bf16.gmra.mrb[0].mxu0 %v926
        %v1098 = vpop.f32.mrb[0].mxu0
        %v1099 = vadd.f32 %v974, %v1098
        %v1100 = vpop.f32.mrb[0].mxu0
        %v1101 = vpop.f32.mrb[0].mxu0
        %v1102 = vadd.f32 %v974, %v1101
        %v1103 = vpop.f32.mrb[0].mxu0
        %1104 = vmatprep.mubr.bf16.mxu0 0
        %1105 = vmatmul.mubr.bf16.gmra.mrb[0].mxu0 %v927
        %v1106 = vpop.f32.mrb[0].mxu0
        %v1107 = vadd.f32 %v974, %v1106
        %v1108 = vpop.f32.mrb[0].mxu0
        %v1109 = vpop.f32.mrb[0].mxu0
        %v1110 = vadd.f32 %v974, %v1109
        %v1111 = vpop.f32.mrb[0].mxu0
        %1112 = vmatprep.mubr.bf16.mxu0 0
        %1113 = vmatmul.mubr.bf16.gmra.mrb[0].mxu0 %v928
        %v1114 = vpop.f32.mrb[0].mxu0
        %v1115 = vadd.f32 %v974, %v1114
        %v1116 = vpop.f32.mrb[0].mxu0
        %v1117 = vpop.f32.mrb[0].mxu0
        %v1118 = vadd.f32 %v974, %v1117
        %v1119 = vpop.f32.mrb[0].mxu0
        %1120 = vmatprep.mubr.bf16.mxu0 0
        %1121 = vmatmul.mubr.bf16.gmra.mrb[0].mxu0 %v929
        %v1122 = vpop.f32.mrb[0].mxu0
        %v1123 = vadd.f32 %v974, %v1122
        %v1124 = vpop.f32.mrb[0].mxu0
        %v1125 = vpop.f32.mrb[0].mxu0
        %v1126 = vadd.f32 %v974, %v1125
        %v1127 = vpop.f32.mrb[0].mxu0
        %1128 = vmatprep.mubr.bf16.mxu0 0
        %1129 = vmatmul.mubr.bf16.gmra.mrb[0].mxu0 %v930
        %v1130 = vpop.f32.mrb[0].mxu0
        %v1131 = vadd.f32 %v974, %v1130
        %v1132 = vpop.f32.mrb[0].mxu0
        %v1133 = vpop.f32.mrb[0].mxu0
        %v1134 = vadd.f32 %v974, %v1133
        %v1135 = vpop.f32.mrb[0].mxu0
        %1136 = vmatprep.mubr.bf16.mxu0 0
        %1137 = vmatmul.mubr.bf16.gmra.mrb[0].mxu0 %v931
        %v1138 = vpop.f32.mrb[0].mxu0
        %v1139 = vadd.f32 %v974, %v1138
        %v1140 = vpop.f32.mrb[0].mxu0
        %v1141 = vpop.f32.mrb[0].mxu0
        %v1142 = vadd.f32 %v974, %v1141
        %v1143 = vpop.f32.mrb[0].mxu0
        %1144 = vmatprep.mubr.bf16.mxu0 0
        %1145 = vmatmul.mubr.bf16.gmra.mrb[0].mxu0 %v932
        %v1146 = vpop.f32.mrb[0].mxu0
        %v1147 = vadd.f32 %v974, %v1146
        %v1148 = vpop.f32.mrb[0].mxu0
        %v1149 = vpop.f32.mrb[0].mxu0
        %v1150 = vadd.f32 %v974, %v1149
        %v1151 = vpop.f32.mrb[0].mxu0
        %1152 = vmatprep.mubr.bf16.mxu0 0
        %1153 = vmatmul.mubr.bf16.gmra.mrb[0].mxu0 %v933
        %v1154 = vpop.f32.mrb[0].mxu0
        %v1155 = vadd.f32 %v974, %v1154
        %v1156 = vpop.f32.mrb[0].mxu0
        %v1157 = vpop.f32.mrb[0].mxu0
        %v1158 = vadd.f32 %v974, %v1157
        %v1159 = vpop.f32.mrb[0].mxu0
        %1160 = vmatprep.mubr.bf16.mxu0 0
        %1161 = vmatmul.mubr.bf16.gmra.mrb[0].mxu0 %v934
        %v1162 = vpop.f32.mrb[0].mxu0
        %v1163 = vadd.f32 %v974, %v1162
        %v1164 = vpop.f32.mrb[0].mxu0
        %v1165 = vpop.f32.mrb[0].mxu0
        %v1166 = vadd.f32 %v974, %v1165
        %v1167 = vpop.f32.mrb[0].mxu0
        %1168 = vmatprep.mubr.bf16.mxu0 0
        %1169 = vmatmul.mubr.bf16.gmra.mrb[0].mxu0 %v935
        %v1170 = vpop.f32.mrb[0].mxu0
        %v1171 = vadd.f32 %v974, %v1170
        %v1172 = vpop.f32.mrb[0].mxu0
        %v1173 = vpop.f32.mrb[0].mxu0
        %v1174 = vadd.f32 %v974, %v1173
        %v1175 = vpop.f32.mrb[0].mxu0
        %1176 = vmatprep.mubr.bf16.mxu0 0
        %1177 = vmatmul.mubr.bf16.gmra.mrb[0].mxu0 %v936
        %v1178 = vpop.f32.mrb[0].mxu0
        %v1179 = vadd.f32 %v974, %v1178
        %v1180 = vpop.f32.mrb[0].mxu0
        %v1181 = vpop.f32.mrb[0].mxu0
        %v1182 = vadd.f32 %v974, %v1181
        %v1183 = vpop.f32.mrb[0].mxu0
        %1184 = vmatprep.mubr.bf16.mxu0 0
        %1185 = vmatmul.mubr.bf16.gmra.mrb[0].mxu0 %v937
        %v1186 = vpop.f32.mrb[0].mxu0
        %v1187 = vadd.f32 %v974, %v1186
        %v1188 = vpop.f32.mrb[0].mxu0
        %v1189 = vpop.f32.mrb[0].mxu0
        %v1190 = vadd.f32 %v974, %v1189
        %v1191 = vpop.f32.mrb[0].mxu0
        %1192 = vmatprep.mubr.bf16.mxu0 0
        %1193 = vmatmul.mubr.bf16.gmra.mrb[0].mxu0 %v938
        %v1194 = vpop.f32.mrb[0].mxu0
        %v1195 = vadd.f32 %v974, %v1194
        %v1196 = vpop.f32.mrb[0].mxu0
        %v1197 = vpop.f32.mrb[0].mxu0
        %v1198 = vadd.f32 %v974, %v1197
        %v1199 = vpop.f32.mrb[0].mxu0
        %1200 = vmatprep.mubr.bf16.mxu0 0
        %1201 = vmatmul.mubr.bf16.gmra.mrb[0].mxu0 %v939
        %v1202 = vpop.f32.mrb[0].mxu0
        %v1203 = vadd.f32 %v974, %v1202
        %v1204 = vpop.f32.mrb[0].mxu0
        %v1205 = vpop.f32.mrb[0].mxu0
        %v1206 = vadd.f32 %v974, %v1205
        %v1207 = vpop.f32.mrb[0].mxu0
        %1208 = vmatprep.mubr.bf16.mxu0 0
        %1209 = vmatmul.mubr.bf16.gmra.mrb[0].mxu0 %v940
        %v1210 = vpop.f32.mrb[0].mxu0
        %v1211 = vadd.f32 %v974, %v1210
        %v1212 = vpop.f32.mrb[0].mxu0
        %v1213 = vpop.f32.mrb[0].mxu0
        %v1214 = vadd.f32 %v974, %v1213
        %v1215 = vpop.f32.mrb[0].mxu0
        %1216 = vmatprep.mubr.bf16.mxu0 0
        %1217 = vmatmul.mubr.bf16.gmra.mrb[0].mxu0 %v941
        %v1218 = vpop.f32.mrb[0].mxu0
        %v1219 = vadd.f32 %v974, %v1218
        %v1220 = vpop.f32.mrb[0].mxu0
        %v1221 = vpop.f32.mrb[0].mxu0
        %v1222 = vadd.f32 %v974, %v1221
        %v1223 = vpop.f32.mrb[0].mxu0
        %1224 = vmatprep.mubr.bf16.mxu0 0
        %1225 = vmatmul.mubr.bf16.gmra.mrb[0].mxu0 %v942
        %v1226 = vpop.f32.mrb[0].mxu0
        %v1227 = vadd.f32 %v974, %v1226
        %v1228 = vpop.f32.mrb[0].mxu0
        %v1229 = vpop.f32.mrb[0].mxu0
        %v1230 = vadd.f32 %v974, %v1229
        %v1231 = vpop.f32.mrb[0].mxu0
        %1232 = vmatprep.mubr.bf16.mxu0 0
        %1233 = vmatmul.mubr.bf16.gmra.mrb[0].mxu0 %v943
        %v1234 = vpop.f32.mrb[0].mxu0
        %v1235 = vadd.f32 %v974, %v1234
        %v1236 = vpop.f32.mrb[0].mxu0
        %v1237 = vpop.f32.mrb[0].mxu0
        %v1238 = vadd.f32 %v974, %v1237
        %v1239 = vpop.f32.mrb[0].mxu0
        %1240 = vmatprep.mubr.bf16.mxu0 0
        %1241 = vmatmul.mubr.bf16.gmra.mrb[0].mxu0 %v944
        %v1242 = vpop.f32.mrb[0].mxu0
        %v1243 = vadd.f32 %v974, %v1242
        %v1244 = vpop.f32.mrb[0].mxu0
        %v1245 = vpop.f32.mrb[0].mxu0
        %v1246 = vadd.f32 %v974, %v1245
        %v1247 = vpop.f32.mrb[0].mxu0
        %1248 = vmatprep.mubr.bf16.mxu0 0
        %1249 = vmatmul.mubr.bf16.gmra.mrb[0].mxu0 %v945
        %v1250 = vpop.f32.mrb[0].mxu0
        %v1251 = vadd.f32 %v974, %v1250
        %v1252 = vpop.f32.mrb[0].mxu0
        %v1253 = vpop.f32.mrb[0].mxu0
        %v1254 = vadd.f32 %v974, %v1253
        %v1255 = vpop.f32.mrb[0].mxu0
        %1256 = vmatprep.mubr.bf16.mxu0 0
        %1257 = vmatmul.mubr.bf16.gmra.mrb[0].mxu0 %v946
        %v1258 = vpop.f32.mrb[0].mxu0
        %v1259 = vadd.f32 %v974, %v1258
        %v1260 = vpop.f32.mrb[0].mxu0
        %v1261 = vpop.f32.mrb[0].mxu0
        %v1262 = vadd.f32 %v974, %v1261
        %v1263 = vpop.f32.mrb[0].mxu0
        %1264 = vmatprep.mubr.bf16.mxu0 0
        %1265 = vmatmul.mubr.bf16.gmra.mrb[0].mxu0 %v947
        %v1266 = vpop.f32.mrb[0].mxu0
        %v1267 = vadd.f32 %v974, %v1266
        %v1268 = vpop.f32.mrb[0].mxu0
        %v1269 = vpop.f32.mrb[0].mxu0
        %v1270 = vadd.f32 %v974, %v1269
        %v1271 = vpop.f32.mrb[0].mxu0
        %1272 = vmatprep.mubr.bf16.mxu0 0
        %1273 = vmatmul.mubr.bf16.gmra.mrb[0].mxu0 %v948
        %v1274 = vpop.f32.mrb[0].mxu0
        %v1275 = vadd.f32 %v974, %v1274
        %v1276 = vpop.f32.mrb[0].mxu0
        %v1277 = vpop.f32.mrb[0].mxu0
        %v1278 = vadd.f32 %v974, %v1277
        %v1279 = vpop.f32.mrb[0].mxu0
        %1280 = vmatprep.mubr.bf16.mxu0 0
        %1281 = vmatmul.mubr.bf16.gmra.mrb[0].mxu0 %v949
        %v1282 = vpop.f32.mrb[0].mxu0
        %v1283 = vadd.f32 %v974, %v1282
        %v1284 = vpop.f32.mrb[0].mxu0
        %v1285 = vpop.f32.mrb[0].mxu0
        %v1286 = vadd.f32 %v974, %v1285
        %v1287 = vpop.f32.mrb[0].mxu0
        %1288 = vmatprep.mubr.bf16.mxu0 0
        %1289 = vmatmul.mubr.bf16.gmra.mrb[0].mxu0 %v950
        %v1290 = vpop.f32.mrb[0].mxu0
        %v1291 = vadd.f32 %v974, %v1290
        %v1292 = vpop.f32.mrb[0].mxu0
        %v1293 = vpop.f32.mrb[0].mxu0
        %v1294 = vadd.f32 %v974, %v1293
        %v1295 = vpop.f32.mrb[0].mxu0
        %1296 = vmatprep.mubr.bf16.mxu0 0
        %1297 = vmatmul.mubr.bf16.gmra.mrb[0].mxu0 %v951
        %v1298 = vpop.f32.mrb[0].mxu0
        %v1299 = vadd.f32 %v974, %v1298
        %v1300 = vpop.f32.mrb[0].mxu0
        %v1301 = vpop.f32.mrb[0].mxu0
        %v1302 = vadd.f32 %v974, %v1301
        %v1303 = vpop.f32.mrb[0].mxu0
        %1304 = vmatprep.mubr.bf16.mxu0 0
        %1305 = vmatmul.mubr.bf16.gmra.mrb[0].mxu0 %v952
        %v1306 = vpop.f32.mrb[0].mxu0
        %v1307 = vadd.f32 %v974, %v1306
        %v1308 = vpop.f32.mrb[0].mxu0
        %v1309 = vpop.f32.mrb[0].mxu0
        %v1310 = vadd.f32 %v974, %v1309
        %v1311 = vpop.f32.mrb[0].mxu0
        %1312 = vdwg.mxu0
        %v1313 = vmax.f32 %v1059, 0.0
        %v1314 = vmax.f32 %v1062, 0.0
        %v1315 = vmax.f32 %v1067, 0.0
        %v1316 = vmax.f32 %v1070, 0.0
        %v1317 = vmax.f32 %v1075, 0.0
        %v1318 = vmax.f32 %v1078, 0.0
        %v1319 = vmax.f32 %v1083, 0.0
        %v1320 = vmax.f32 %v1086, 0.0
        %v1321 = vmax.f32 %v1091, 0.0
        %v1322 = vmax.f32 %v1094, 0.0
        %v1323 = vmax.f32 %v1099, 0.0
        %v1324 = vmax.f32 %v1102, 0.0
        %v1325 = vmax.f32 %v1107, 0.0
        %v1326 = vmax.f32 %v1110, 0.0
        %v1327 = vmax.f32 %v1115, 0.0
        %v1328 = vmax.f32 %v1118, 0.0
        %v1329 = vmax.f32 %v1123, 0.0
        %v1330 = vmax.f32 %v1126, 0.0
        %v1331 = vmax.f32 %v1131, 0.0
        %v1332 = vmax.f32 %v1134, 0.0
        %v1333 = vmax.f32 %v1139, 0.0
        %v1334 = vmax.f32 %v1142, 0.0
        %v1335 = vmax.f32 %v1147, 0.0
        %v1336 = vmax.f32 %v1150, 0.0
        %v1337 = vmax.f32 %v1155, 0.0
        %v1338 = vmax.f32 %v1158, 0.0
        %v1339 = vmax.f32 %v1163, 0.0
        %v1340 = vmax.f32 %v1166, 0.0
        %v1341 = vmax.f32 %v1171, 0.0
        %v1342 = vmax.f32 %v1174, 0.0
        %v1343 = vmax.f32 %v1179, 0.0
        %v1344 = vmax.f32 %v1182, 0.0
        %v1345 = vmax.f32 %v1187, 0.0
        %v1346 = vmax.f32 %v1190, 0.0
        %v1347 = vmax.f32 %v1195, 0.0
        %v1348 = vmax.f32 %v1198, 0.0
        %v1349 = vmax.f32 %v1203, 0.0
        %v1350 = vmax.f32 %v1206, 0.0
        %v1351 = vmax.f32 %v1211, 0.0
        %v1352 = vmax.f32 %v1214, 0.0
        %v1353 = vmax.f32 %v1219, 0.0
        %v1354 = vmax.f32 %v1222, 0.0
        %v1355 = vmax.f32 %v1227, 0.0
        %v1356 = vmax.f32 %v1230, 0.0
        %v1357 = vmax.f32 %v1235, 0.0
        %v1358 = vmax.f32 %v1238, 0.0
        %v1359 = vmax.f32 %v1243, 0.0
        %v1360 = vmax.f32 %v1246, 0.0
        %v1361 = vmax.f32 %v1251, 0.0
        %v1362 = vmax.f32 %v1254, 0.0
        %v1363 = vmax.f32 %v1259, 0.0
        %v1364 = vmax.f32 %v1262, 0.0
        %v1365 = vmax.f32 %v1267, 0.0
        %v1366 = vmax.f32 %v1270, 0.0
        %v1367 = vmax.f32 %v1275, 0.0
        %v1368 = vmax.f32 %v1278, 0.0
        %v1369 = vmax.f32 %v1283, 0.0
        %v1370 = vmax.f32 %v1286, 0.0
        %v1371 = vmax.f32 %v1291, 0.0
        %v1372 = vmax.f32 %v1294, 0.0
        %v1373 = vmax.f32 %v1299, 0.0
        %v1374 = vmax.f32 %v1302, 0.0
        %v1375 = vmax.f32 %v1307, 0.0
        %v1376 = vmax.f32 %v1310, 0.0
        %v1377 = vpack.c.bf16 %v1314, %v1313
        %v1378 = vpack.c.bf16 %v1316, %v1315
        %v1379 = vpack.c.bf16 %v1318, %v1317
        %v1380 = vpack.c.bf16 %v1320, %v1319
        %v1381 = vpack.c.bf16 %v1322, %v1321
        %v1382 = vpack.c.bf16 %v1324, %v1323
        %v1383 = vpack.c.bf16 %v1326, %v1325
        %v1384 = vpack.c.bf16 %v1328, %v1327
        %v1385 = vpack.c.bf16 %v1330, %v1329
        %v1386 = vpack.c.bf16 %v1332, %v1331
        %v1387 = vpack.c.bf16 %v1334, %v1333
        %v1388 = vpack.c.bf16 %v1336, %v1335
        %v1389 = vpack.c.bf16 %v1338, %v1337
        %v1390 = vpack.c.bf16 %v1340, %v1339
        %v1391 = vpack.c.bf16 %v1342, %v1341
        %v1392 = vpack.c.bf16 %v1344, %v1343
        %v1393 = vpack.c.bf16 %v1346, %v1345
        %v1394 = vpack.c.bf16 %v1348, %v1347
        %v1395 = vpack.c.bf16 %v1350, %v1349
        %v1396 = vpack.c.bf16 %v1352, %v1351
        %v1397 = vpack.c.bf16 %v1354, %v1353
        %v1398 = vpack.c.bf16 %v1356, %v1355
        %v1399 = vpack.c.bf16 %v1358, %v1357
        %v1400 = vpack.c.bf16 %v1360, %v1359
        %v1401 = vpack.c.bf16 %v1362, %v1361
        %v1402 = vpack.c.bf16 %v1364, %v1363
        %v1403 = vpack.c.bf16 %v1366, %v1365
        %v1404 = vpack.c.bf16 %v1368, %v1367
        %v1405 = vpack.c.bf16 %v1370, %v1369
        %v1406 = vpack.c.bf16 %v1372, %v1371
        %v1407 = vpack.c.bf16 %v1374, %v1373
        %v1408 = vpack.c.bf16 %v1376, %v1375
        %v1409 = vld [vmem:[%s5] sm:$0xff]
        %v1410 = vld [vmem:[%s5 + $0x8] sm:$0xf]
        %v1411 = vld [vmem:[%s5 + $0xc] sm:$0xff]
        %v1412 = vld [vmem:[%s5 + $0x14] sm:$0xf]
        %v1413 = vld [vmem:[%s5 + $0x18] sm:$0xff]
        %v1414 = vld [vmem:[%s5 + $0x20] sm:$0xf]
        %v1415 = vld [vmem:[%s5 + $0x24] sm:$0xff]
        %v1416 = vld [vmem:[%s5 + $0x2c] sm:$0xf]
        %v1417 = vld [vmem:[%s5 + $0x30] sm:$0xff]
        %v1418 = vld [vmem:[%s5 + $0x38] sm:$0xf]
        %v1419 = vld [vmem:[%s5 + $0x3c] sm:$0xff]
        %v1420 = vld [vmem:[%s5 + $0x44] sm:$0xf]
        %v1421 = vld [vmem:[%s5 + $0x48] sm:$0xff]
        %v1422 = vld [vmem:[%s5 + $0x50] sm:$0xf]
        %v1423 = vld [vmem:[%s5 + $0x54] sm:$0xff]
        %v1424 = vld [vmem:[%s5 + $0x5c] sm:$0xf]
        %v1425 = vld [vmem:[%s5 + $0x60] sm:$0xff]
        %v1426 = vld [vmem:[%s5 + $0x68] sm:$0xf]
        %v1427 = vld [vmem:[%s5 + $0x6c] sm:$0xff]
        %v1428 = vld [vmem:[%s5 + $0x74] sm:$0xf]
        %v1429 = vld [vmem:[%s5 + $0x78] sm:$0xff]
        %v1430 = vld [vmem:[%s5 + $0x80] sm:$0xf]
        %v1431 = vld [vmem:[%s5 + $0x84] sm:$0xff]
        %v1432 = vld [vmem:[%s5 + $0x8c] sm:$0xf]
        %v1433 = vld [vmem:[%s5 + $0x90] sm:$0xff]
        %v1434 = vld [vmem:[%s5 + $0x98] sm:$0xf]
        %v1435 = vld [vmem:[%s5 + $0x9c] sm:$0xff]
        %v1436 = vld [vmem:[%s5 + $0xa4] sm:$0xf]
        %v1437 = vld [vmem:[%s5 + $0xa8] sm:$0xff]
        %v1438 = vld [vmem:[%s5 + $0xb0] sm:$0xf]
        %v1439 = vld [vmem:[%s5 + $0xb4] sm:$0xff]
        %v1440 = vld [vmem:[%s5 + $0xbc] sm:$0xf]
        %v1441 = vld [vmem:[#allocation9] sm:$0x7]
        %v1443 = vlaneseq
        %v1444 = vshrl.u32 %v1443, 7
        %v1445 = vsub.s32 0, %v1444
        %v1446 = vrot.slane %v1441, %v1445
        %v1447 = vlaneseq
        %v1448 = vshrl.u32 %v1447, 7
        %v1449 = vsub.s32 1, %v1448
        %v1450 = vrot.slane %v1441, %v1449
        %v1451 = vlaneseq
        %v1452 = vshrl.u32 %v1451, 7
        %v1453 = vsub.s32 2, %v1452
        %v1454 = vrot.slane %v1441, %v1453
        %v1490 = vunpack.c.l.b16 %v1409
        %v1491 = vunpack.c.h.b16 %v1409
        %v1492 = vunpack.c.l.b16 %v1410
        %v1493 = vunpack.c.l.b16 %v1411
        %v1494 = vunpack.c.h.b16 %v1411
        %v1495 = vunpack.c.l.b16 %v1412
        %v1496 = vunpack.c.l.b16 %v1413
        %v1497 = vunpack.c.h.b16 %v1413
        %v1498 = vunpack.c.l.b16 %v1414
        %v1499 = vunpack.c.l.b16 %v1415
        %v1500 = vunpack.c.h.b16 %v1415
        %v1501 = vunpack.c.l.b16 %v1416
        %v1502 = vunpack.c.l.b16 %v1417
        %v1503 = vunpack.c.h.b16 %v1417
        %v1504 = vunpack.c.l.b16 %v1418
        %v1505 = vunpack.c.l.b16 %v1419
        %v1506 = vunpack.c.h.b16 %v1419
        %v1507 = vunpack.c.l.b16 %v1420
        %v1508 = vunpack.c.l.b16 %v1421
        %v1509 = vunpack.c.h.b16 %v1421
        %v1510 = vunpack.c.l.b16 %v1422
        %v1511 = vunpack.c.l.b16 %v1423
        %v1512 = vunpack.c.h.b16 %v1423
        %v1513 = vunpack.c.l.b16 %v1424
        %v1514 = vunpack.c.l.b16 %v1425
        %v1515 = vunpack.c.h.b16 %v1425
        %v1516 = vunpack.c.l.b16 %v1426
        %v1517 = vunpack.c.l.b16 %v1427
        %v1518 = vunpack.c.h.b16 %v1427
        %v1519 = vunpack.c.l.b16 %v1428
        %v1520 = vunpack.c.l.b16 %v1429
        %v1521 = vunpack.c.h.b16 %v1429
        %v1522 = vunpack.c.l.b16 %v1430
        %v1523 = vunpack.c.l.b16 %v1431
        %v1524 = vunpack.c.h.b16 %v1431
        %v1525 = vunpack.c.l.b16 %v1432
        %v1526 = vunpack.c.l.b16 %v1433
        %v1527 = vunpack.c.h.b16 %v1433
        %v1528 = vunpack.c.l.b16 %v1434
        %v1529 = vunpack.c.l.b16 %v1435
        %v1530 = vunpack.c.h.b16 %v1435
        %v1531 = vunpack.c.l.b16 %v1436
        %v1532 = vunpack.c.l.b16 %v1437
        %v1533 = vunpack.c.h.b16 %v1437
        %v1534 = vunpack.c.l.b16 %v1438
        %v1535 = vunpack.c.l.b16 %v1439
        %v1536 = vunpack.c.h.b16 %v1439
        %v1537 = vunpack.c.l.b16 %v1440
        %v1538 = vpack.c.b16 %v1493, %v1490
        %v1539 = vpack.c.b16 %v1494, %v1491
        %v1540 = vpack.c.b16 %v1495, %v1492
        %v1541 = vpack.c.b16 %v1499, %v1496
        %v1542 = vpack.c.b16 %v1500, %v1497
        %v1543 = vpack.c.b16 %v1501, %v1498
        %v1544 = vpack.c.b16 %v1505, %v1502
        %v1545 = vpack.c.b16 %v1506, %v1503
        %v1546 = vpack.c.b16 %v1507, %v1504
        %v1547 = vpack.c.b16 %v1511, %v1508
        %v1548 = vpack.c.b16 %v1512, %v1509
        %v1549 = vpack.c.b16 %v1513, %v1510
        %v1550 = vpack.c.b16 %v1517, %v1514
        %v1551 = vpack.c.b16 %v1518, %v1515
        %v1552 = vpack.c.b16 %v1519, %v1516
        %v1553 = vpack.c.b16 %v1523, %v1520
        %v1554 = vpack.c.b16 %v1524, %v1521
        %v1555 = vpack.c.b16 %v1525, %v1522
        %v1556 = vpack.c.b16 %v1529, %v1526
        %v1557 = vpack.c.b16 %v1530, %v1527
        %v1558 = vpack.c.b16 %v1531, %v1528
        %v1559 = vpack.c.b16 %v1535, %v1532
        %v1560 = vpack.c.b16 %v1536, %v1533
        %v1561 = vpack.c.b16 %v1537, %v1534
        %1586 = vmatprep.subr.bf16.mxu0 %v1539
        %1587 = vmatpush1.bf16.msra.mxu0 %v1538
        %1588 = vmatprep.subr.bf16.mxu0 %v1542
        %1589 = vmatpush1.bf16.msra.mxu0 %v1541
        %1590 = vmatprep.subr.bf16.mxu0 %v1545
        %1591 = vmatpush1.bf16.msra.mxu0 %v1544
        %1592 = vmatprep.subr.bf16.mxu0 %v1548
        %1593 = vmatpush1.bf16.msra.mxu0 %v1547
        %1594 = vmatprep.subr.bf16.mxu0 %v1551
        %1595 = vmatpush1.bf16.msra.mxu0 %v1550
        %1596 = vmatprep.subr.bf16.mxu0 %v1554
        %1597 = vmatpush1.bf16.msra.mxu0 %v1553
        %1598 = vmatprep.subr.bf16.mxu0 %v1557
        %1599 = vmatpush1.bf16.msra.mxu0 %v1556
        %1600 = vmatprep.subr.bf16.mxu0 %v1560
        %1601 = vmatpush1.bf16.msra.mxu0 %v1559
        %1602 = vmatprep.subr.bf16.mxu0 0
        %1603 = vmatpush1.bf16.msra.mxu0 0
        %1604 = vmatprep.subr.bf16.mxu0 0
        %1605 = vmatpush1.bf16.msra.mxu0 0
        %1606 = vmatprep.subr.bf16.mxu0 0
        %1607 = vmatpush1.bf16.msra.mxu0 0
        %1608 = vmatprep.subr.bf16.mxu0 0
        %1609 = vmatpush1.bf16.msra.mxu0 0
        %1610 = vmatprep.subr.bf16.mxu0 0
        %1611 = vmatpush1.bf16.msra.mxu0 0
        %1612 = vmatprep.subr.bf16.mxu0 0
        %1613 = vmatpush1.bf16.msra.mxu0 0
        %1614 = vmatprep.subr.bf16.mxu0 0
        %1615 = vmatpush1.bf16.msra.mxu0 0
        %1616 = vmatprep.subr.bf16.mxu0 0
        %1617 = vmatpush1.bf16.msra.mxu0 0
        %1618 = vmatprep.mubr.bf16.mxu0 0
        %1619 = vmatmul.mubr.bf16.gmra.mrb[0].mxu0 %v1377
        %v1620 = vpop.f32.mrb[0].mxu0
        %v1621 = vadd.f32 %v1446, %v1620
        %v1622 = vpop.f32.mrb[0].mxu0
        %v1623 = vadd.f32 %v1450, %v1622
        %v1624 = vpop.f32.mrb[0].mxu0
        %v1625 = vadd.f32 %v1446, %v1624
        %v1626 = vpop.f32.mrb[0].mxu0
        %v1627 = vadd.f32 %v1450, %v1626
        %1628 = vmatprep.mubr.bf16.mxu0 0
        %1629 = vmatmul.mubr.bf16.gmra.mrb[0].mxu0 %v1378
        %v1630 = vpop.f32.mrb[0].mxu0
        %v1631 = vadd.f32 %v1446, %v1630
        %v1632 = vpop.f32.mrb[0].mxu0
        %v1633 = vadd.f32 %v1450, %v1632
        %v1634 = vpop.f32.mrb[0].mxu0
        %v1635 = vadd.f32 %v1446, %v1634
        %v1636 = vpop.f32.mrb[0].mxu0
        %v1637 = vadd.f32 %v1450, %v1636
        %1638 = vmatprep.mubr.bf16.mxu0 0
        %1639 = vmatmul.mubr.bf16.gmra.mrb[0].mxu0 %v1379
        %v1640 = vpop.f32.mrb[0].mxu0
        %v1641 = vadd.f32 %v1446, %v1640
        %v1642 = vpop.f32.mrb[0].mxu0
        %v1643 = vadd.f32 %v1450, %v1642
        %v1644 = vpop.f32.mrb[0].mxu0
        %v1645 = vadd.f32 %v1446, %v1644
        %v1646 = vpop.f32.mrb[0].mxu0
        %v1647 = vadd.f32 %v1450, %v1646
        %1648 = vmatprep.mubr.bf16.mxu0 0
        %1649 = vmatmul.mubr.bf16.gmra.mrb[0].mxu0 %v1380
        %v1650 = vpop.f32.mrb[0].mxu0
        %v1651 = vadd.f32 %v1446, %v1650
        %v1652 = vpop.f32.mrb[0].mxu0
        %v1653 = vadd.f32 %v1450, %v1652
        %v1654 = vpop.f32.mrb[0].mxu0
        %v1655 = vadd.f32 %v1446, %v1654
        %v1656 = vpop.f32.mrb[0].mxu0
        %v1657 = vadd.f32 %v1450, %v1656
        %1658 = vmatprep.mubr.bf16.mxu0 0
        %1659 = vmatmul.mubr.bf16.gmra.mrb[0].mxu0 %v1381
        %v1660 = vpop.f32.mrb[0].mxu0
        %v1661 = vadd.f32 %v1446, %v1660
        %v1662 = vpop.f32.mrb[0].mxu0
        %v1663 = vadd.f32 %v1450, %v1662
        %v1664 = vpop.f32.mrb[0].mxu0
        %v1665 = vadd.f32 %v1446, %v1664
        %v1666 = vpop.f32.mrb[0].mxu0
        %v1667 = vadd.f32 %v1450, %v1666
        %1668 = vmatprep.mubr.bf16.mxu0 0
        %1669 = vmatmul.mubr.bf16.gmra.mrb[0].mxu0 %v1382
        %v1670 = vpop.f32.mrb[0].mxu0
        %v1671 = vadd.f32 %v1446, %v1670
        %v1672 = vpop.f32.mrb[0].mxu0
        %v1673 = vadd.f32 %v1450, %v1672
        %v1674 = vpop.f32.mrb[0].mxu0
        %v1675 = vadd.f32 %v1446, %v1674
        %v1676 = vpop.f32.mrb[0].mxu0
        %v1677 = vadd.f32 %v1450, %v1676
        %1678 = vmatprep.mubr.bf16.mxu0 0
        %1679 = vmatmul.mubr.bf16.gmra.mrb[0].mxu0 %v1383
        %v1680 = vpop.f32.mrb[0].mxu0
        %v1681 = vadd.f32 %v1446, %v1680
        %v1682 = vpop.f32.mrb[0].mxu0
        %v1683 = vadd.f32 %v1450, %v1682
        %v1684 = vpop.f32.mrb[0].mxu0
        %v1685 = vadd.f32 %v1446, %v1684
        %v1686 = vpop.f32.mrb[0].mxu0
        %v1687 = vadd.f32 %v1450, %v1686
        %1688 = vmatprep.mubr.bf16.mxu0 0
        %1689 = vmatmul.mubr.bf16.gmra.mrb[0].mxu0 %v1384
        %v1690 = vpop.f32.mrb[0].mxu0
        %v1691 = vadd.f32 %v1446, %v1690
        %v1692 = vpop.f32.mrb[0].mxu0
        %v1693 = vadd.f32 %v1450, %v1692
        %v1694 = vpop.f32.mrb[0].mxu0
        %v1695 = vadd.f32 %v1446, %v1694
        %v1696 = vpop.f32.mrb[0].mxu0
        %v1697 = vadd.f32 %v1450, %v1696
        %1698 = vmatprep.mubr.bf16.mxu0 0
        %1699 = vmatmul.mubr.bf16.gmra.mrb[0].mxu0 %v1385
        %v1700 = vpop.f32.mrb[0].mxu0
        %v1701 = vadd.f32 %v1446, %v1700
        %v1702 = vpop.f32.mrb[0].mxu0
        %v1703 = vadd.f32 %v1450, %v1702
        %v1704 = vpop.f32.mrb[0].mxu0
        %v1705 = vadd.f32 %v1446, %v1704
        %v1706 = vpop.f32.mrb[0].mxu0
        %v1707 = vadd.f32 %v1450, %v1706
        %1708 = vmatprep.mubr.bf16.mxu0 0
        %1709 = vmatmul.mubr.bf16.gmra.mrb[0].mxu0 %v1386
        %v1710 = vpop.f32.mrb[0].mxu0
        %v1711 = vadd.f32 %v1446, %v1710
        %v1712 = vpop.f32.mrb[0].mxu0
        %v1713 = vadd.f32 %v1450, %v1712
        %v1714 = vpop.f32.mrb[0].mxu0
        %v1715 = vadd.f32 %v1446, %v1714
        %v1716 = vpop.f32.mrb[0].mxu0
        %v1717 = vadd.f32 %v1450, %v1716
        %1718 = vmatprep.mubr.bf16.mxu0 0
        %1719 = vmatmul.mubr.bf16.gmra.mrb[0].mxu0 %v1387
        %v1720 = vpop.f32.mrb[0].mxu0
        %v1721 = vadd.f32 %v1446, %v1720
        %v1722 = vpop.f32.mrb[0].mxu0
        %v1723 = vadd.f32 %v1450, %v1722
        %v1724 = vpop.f32.mrb[0].mxu0
        %v1725 = vadd.f32 %v1446, %v1724
        %v1726 = vpop.f32.mrb[0].mxu0
        %v1727 = vadd.f32 %v1450, %v1726
        %1728 = vmatprep.mubr.bf16.mxu0 0
        %1729 = vmatmul.mubr.bf16.gmra.mrb[0].mxu0 %v1388
        %v1730 = vpop.f32.mrb[0].mxu0
        %v1731 = vadd.f32 %v1446, %v1730
        %v1732 = vpop.f32.mrb[0].mxu0
        %v1733 = vadd.f32 %v1450, %v1732
        %v1734 = vpop.f32.mrb[0].mxu0
        %v1735 = vadd.f32 %v1446, %v1734
        %v1736 = vpop.f32.mrb[0].mxu0
        %v1737 = vadd.f32 %v1450, %v1736
        %1738 = vmatprep.mubr.bf16.mxu0 0
        %1739 = vmatmul.mubr.bf16.gmra.mrb[0].mxu0 %v1389
        %v1740 = vpop.f32.mrb[0].mxu0
        %v1741 = vadd.f32 %v1446, %v1740
        %v1742 = vpop.f32.mrb[0].mxu0
        %v1743 = vadd.f32 %v1450, %v1742
        %v1744 = vpop.f32.mrb[0].mxu0
        %v1745 = vadd.f32 %v1446, %v1744
        %v1746 = vpop.f32.mrb[0].mxu0
        %v1747 = vadd.f32 %v1450, %v1746
        %1748 = vmatprep.mubr.bf16.mxu0 0
        %1749 = vmatmul.mubr.bf16.gmra.mrb[0].mxu0 %v1390
        %v1750 = vpop.f32.mrb[0].mxu0
        %v1751 = vadd.f32 %v1446, %v1750
        %v1752 = vpop.f32.mrb[0].mxu0
        %v1753 = vadd.f32 %v1450, %v1752
        %v1754 = vpop.f32.mrb[0].mxu0
        %v1755 = vadd.f32 %v1446, %v1754
        %v1756 = vpop.f32.mrb[0].mxu0
        %v1757 = vadd.f32 %v1450, %v1756
        %1758 = vmatprep.mubr.bf16.mxu0 0
        %1759 = vmatmul.mubr.bf16.gmra.mrb[0].mxu0 %v1391
        %v1760 = vpop.f32.mrb[0].mxu0
        %v1761 = vadd.f32 %v1446, %v1760
        %v1762 = vpop.f32.mrb[0].mxu0
        %v1763 = vadd.f32 %v1450, %v1762
        %v1764 = vpop.f32.mrb[0].mxu0
        %v1765 = vadd.f32 %v1446, %v1764
        %v1766 = vpop.f32.mrb[0].mxu0
        %v1767 = vadd.f32 %v1450, %v1766
        %1768 = vmatprep.mubr.bf16.mxu0 0
        %1769 = vmatmul.mubr.bf16.gmra.mrb[0].mxu0 %v1392
        %v1770 = vpop.f32.mrb[0].mxu0
        %v1771 = vadd.f32 %v1446, %v1770
        %v1772 = vpop.f32.mrb[0].mxu0
        %v1773 = vadd.f32 %v1450, %v1772
        %v1774 = vpop.f32.mrb[0].mxu0
        %v1775 = vadd.f32 %v1446, %v1774
        %v1776 = vpop.f32.mrb[0].mxu0
        %v1777 = vadd.f32 %v1450, %v1776
        %1778 = vmatprep.mubr.bf16.mxu0 0
        %1779 = vmatmul.mubr.bf16.gmra.mrb[0].mxu0 %v1393
        %v1780 = vpop.f32.mrb[0].mxu0
        %v1781 = vadd.f32 %v1446, %v1780
        %v1782 = vpop.f32.mrb[0].mxu0
        %v1783 = vadd.f32 %v1450, %v1782
        %v1784 = vpop.f32.mrb[0].mxu0
        %v1785 = vadd.f32 %v1446, %v1784
        %v1786 = vpop.f32.mrb[0].mxu0
        %v1787 = vadd.f32 %v1450, %v1786
        %1788 = vmatprep.mubr.bf16.mxu0 0
        %1789 = vmatmul.mubr.bf16.gmra.mrb[0].mxu0 %v1394
        %v1790 = vpop.f32.mrb[0].mxu0
        %v1791 = vadd.f32 %v1446, %v1790
        %v1792 = vpop.f32.mrb[0].mxu0
        %v1793 = vadd.f32 %v1450, %v1792
        %v1794 = vpop.f32.mrb[0].mxu0
        %v1795 = vadd.f32 %v1446, %v1794
        %v1796 = vpop.f32.mrb[0].mxu0
        %v1797 = vadd.f32 %v1450, %v1796
        %1798 = vmatprep.mubr.bf16.mxu0 0
        %1799 = vmatmul.mubr.bf16.gmra.mrb[0].mxu0 %v1395
        %v1800 = vpop.f32.mrb[0].mxu0
        %v1801 = vadd.f32 %v1446, %v1800
        %v1802 = vpop.f32.mrb[0].mxu0
        %v1803 = vadd.f32 %v1450, %v1802
        %v1804 = vpop.f32.mrb[0].mxu0
        %v1805 = vadd.f32 %v1446, %v1804
        %v1806 = vpop.f32.mrb[0].mxu0
        %v1807 = vadd.f32 %v1450, %v1806
        %1808 = vmatprep.mubr.bf16.mxu0 0
        %1809 = vmatmul.mubr.bf16.gmra.mrb[0].mxu0 %v1396
        %v1810 = vpop.f32.mrb[0].mxu0
        %v1811 = vadd.f32 %v1446, %v1810
        %v1812 = vpop.f32.mrb[0].mxu0
        %v1813 = vadd.f32 %v1450, %v1812
        %v1814 = vpop.f32.mrb[0].mxu0
        %v1815 = vadd.f32 %v1446, %v1814
        %v1816 = vpop.f32.mrb[0].mxu0
        %v1817 = vadd.f32 %v1450, %v1816
        %1818 = vmatprep.mubr.bf16.mxu0 0
        %1819 = vmatmul.mubr.bf16.gmra.mrb[0].mxu0 %v1397
        %v1820 = vpop.f32.mrb[0].mxu0
        %v1821 = vadd.f32 %v1446, %v1820
        %v1822 = vpop.f32.mrb[0].mxu0
        %v1823 = vadd.f32 %v1450, %v1822
        %v1824 = vpop.f32.mrb[0].mxu0
        %v1825 = vadd.f32 %v1446, %v1824
        %v1826 = vpop.f32.mrb[0].mxu0
        %v1827 = vadd.f32 %v1450, %v1826
        %1828 = vmatprep.mubr.bf16.mxu0 0
        %1829 = vmatmul.mubr.bf16.gmra.mrb[0].mxu0 %v1398
        %v1830 = vpop.f32.mrb[0].mxu0
        %v1831 = vadd.f32 %v1446, %v1830
        %v1832 = vpop.f32.mrb[0].mxu0
        %v1833 = vadd.f32 %v1450, %v1832
        %v1834 = vpop.f32.mrb[0].mxu0
        %v1835 = vadd.f32 %v1446, %v1834
        %v1836 = vpop.f32.mrb[0].mxu0
        %v1837 = vadd.f32 %v1450, %v1836
        %1838 = vmatprep.mubr.bf16.mxu0 0
        %1839 = vmatmul.mubr.bf16.gmra.mrb[0].mxu0 %v1399
        %v1840 = vpop.f32.mrb[0].mxu0
        %v1841 = vadd.f32 %v1446, %v1840
        %v1842 = vpop.f32.mrb[0].mxu0
        %v1843 = vadd.f32 %v1450, %v1842
        %v1844 = vpop.f32.mrb[0].mxu0
        %v1845 = vadd.f32 %v1446, %v1844
        %v1846 = vpop.f32.mrb[0].mxu0
        %v1847 = vadd.f32 %v1450, %v1846
        %1848 = vmatprep.mubr.bf16.mxu0 0
        %1849 = vmatmul.mubr.bf16.gmra.mrb[0].mxu0 %v1400
        %v1850 = vpop.f32.mrb[0].mxu0
        %v1851 = vadd.f32 %v1446, %v1850
        %v1852 = vpop.f32.mrb[0].mxu0
        %v1853 = vadd.f32 %v1450, %v1852
        %v1854 = vpop.f32.mrb[0].mxu0
        %v1855 = vadd.f32 %v1446, %v1854
        %v1856 = vpop.f32.mrb[0].mxu0
        %v1857 = vadd.f32 %v1450, %v1856
        %1858 = vmatprep.mubr.bf16.mxu0 0
        %1859 = vmatmul.mubr.bf16.gmra.mrb[0].mxu0 %v1401
        %v1860 = vpop.f32.mrb[0].mxu0
        %v1861 = vadd.f32 %v1446, %v1860
        %v1862 = vpop.f32.mrb[0].mxu0
        %v1863 = vadd.f32 %v1450, %v1862
        %v1864 = vpop.f32.mrb[0].mxu0
        %v1865 = vadd.f32 %v1446, %v1864
        %v1866 = vpop.f32.mrb[0].mxu0
        %v1867 = vadd.f32 %v1450, %v1866
        %1868 = vmatprep.mubr.bf16.mxu0 0
        %1869 = vmatmul.mubr.bf16.gmra.mrb[0].mxu0 %v1402
        %v1870 = vpop.f32.mrb[0].mxu0
        %v1871 = vadd.f32 %v1446, %v1870
        %v1872 = vpop.f32.mrb[0].mxu0
        %v1873 = vadd.f32 %v1450, %v1872
        %v1874 = vpop.f32.mrb[0].mxu0
        %v1875 = vadd.f32 %v1446, %v1874
        %v1876 = vpop.f32.mrb[0].mxu0
        %v1877 = vadd.f32 %v1450, %v1876
        %1878 = vmatprep.mubr.bf16.mxu0 0
        %1879 = vmatmul.mubr.bf16.gmra.mrb[0].mxu0 %v1403
        %v1880 = vpop.f32.mrb[0].mxu0
        %v1881 = vadd.f32 %v1446, %v1880
        %v1882 = vpop.f32.mrb[0].mxu0
        %v1883 = vadd.f32 %v1450, %v1882
        %v1884 = vpop.f32.mrb[0].mxu0
        %v1885 = vadd.f32 %v1446, %v1884
        %v1886 = vpop.f32.mrb[0].mxu0
        %v1887 = vadd.f32 %v1450, %v1886
        %1888 = vmatprep.mubr.bf16.mxu0 0
        %1889 = vmatmul.mubr.bf16.gmra.mrb[0].mxu0 %v1404
        %v1890 = vpop.f32.mrb[0].mxu0
        %v1891 = vadd.f32 %v1446, %v1890
        %v1892 = vpop.f32.mrb[0].mxu0
        %v1893 = vadd.f32 %v1450, %v1892
        %v1894 = vpop.f32.mrb[0].mxu0
        %v1895 = vadd.f32 %v1446, %v1894
        %v1896 = vpop.f32.mrb[0].mxu0
        %v1897 = vadd.f32 %v1450, %v1896
        %1898 = vmatprep.mubr.bf16.mxu0 0
        %1899 = vmatmul.mubr.bf16.gmra.mrb[0].mxu0 %v1405
        %v1900 = vpop.f32.mrb[0].mxu0
        %v1901 = vadd.f32 %v1446, %v1900
        %v1902 = vpop.f32.mrb[0].mxu0
        %v1903 = vadd.f32 %v1450, %v1902
        %v1904 = vpop.f32.mrb[0].mxu0
        %v1905 = vadd.f32 %v1446, %v1904
        %v1906 = vpop.f32.mrb[0].mxu0
        %v1907 = vadd.f32 %v1450, %v1906
        %1908 = vmatprep.mubr.bf16.mxu0 0
        %1909 = vmatmul.mubr.bf16.gmra.mrb[0].mxu0 %v1406
        %v1910 = vpop.f32.mrb[0].mxu0
        %v1911 = vadd.f32 %v1446, %v1910
        %v1912 = vpop.f32.mrb[0].mxu0
        %v1913 = vadd.f32 %v1450, %v1912
        %v1914 = vpop.f32.mrb[0].mxu0
        %v1915 = vadd.f32 %v1446, %v1914
        %v1916 = vpop.f32.mrb[0].mxu0
        %v1917 = vadd.f32 %v1450, %v1916
        %1918 = vmatprep.mubr.bf16.mxu0 0
        %1919 = vmatmul.mubr.bf16.gmra.mrb[0].mxu0 %v1407
        %v1920 = vpop.f32.mrb[0].mxu0
        %v1921 = vadd.f32 %v1446, %v1920
        %v1922 = vpop.f32.mrb[0].mxu0
        %v1923 = vadd.f32 %v1450, %v1922
        %v1924 = vpop.f32.mrb[0].mxu0
        %v1925 = vadd.f32 %v1446, %v1924
        %v1926 = vpop.f32.mrb[0].mxu0
        %v1927 = vadd.f32 %v1450, %v1926
        %1928 = vmatprep.mubr.bf16.mxu0 0
        %1929 = vmatmul.mubr.bf16.gmra.mrb[0].mxu0 %v1408
        %v1930 = vpop.f32.mrb[0].mxu0
        %v1931 = vadd.f32 %v1446, %v1930
        %v1932 = vpop.f32.mrb[0].mxu0
        %v1933 = vadd.f32 %v1450, %v1932
        %v1934 = vpop.f32.mrb[0].mxu0
        %v1935 = vadd.f32 %v1446, %v1934
        %v1936 = vpop.f32.mrb[0].mxu0
        %v1937 = vadd.f32 %v1450, %v1936
        %1938 = vdwg.mxu0
        %1939 = vmatprep.subr.bf16.mxu0 0
        %1940 = vmatpush1.bf16.msra.mxu0 %v1540
        %1941 = vmatprep.subr.bf16.mxu0 0
        %1942 = vmatpush1.bf16.msra.mxu0 %v1543
        %1943 = vmatprep.subr.bf16.mxu0 0
        %1944 = vmatpush1.bf16.msra.mxu0 %v1546
        %1945 = vmatprep.subr.bf16.mxu0 0
        %1946 = vmatpush1.bf16.msra.mxu0 %v1549
        %1947 = vmatprep.subr.bf16.mxu0 0
        %1948 = vmatpush1.bf16.msra.mxu0 %v1552
        %1949 = vmatprep.subr.bf16.mxu0 0
        %1950 = vmatpush1.bf16.msra.mxu0 %v1555
        %1951 = vmatprep.subr.bf16.mxu0 0
        %1952 = vmatpush1.bf16.msra.mxu0 %v1558
        %1953 = vmatprep.subr.bf16.mxu0 0
        %1954 = vmatpush1.bf16.msra.mxu0 %v1561
        %1955 = vmatprep.subr.bf16.mxu0 0
        %1956 = vmatpush1.bf16.msra.mxu0 0
        %1957 = vmatprep.subr.bf16.mxu0 0
        %1958 = vmatpush1.bf16.msra.mxu0 0
        %1959 = vmatprep.subr.bf16.mxu0 0
        %1960 = vmatpush1.bf16.msra.mxu0 0
        %1961 = vmatprep.subr.bf16.mxu0 0
        %1962 = vmatpush1.bf16.msra.mxu0 0
        %1963 = vmatprep.subr.bf16.mxu0 0
        %1964 = vmatpush1.bf16.msra.mxu0 0
        %1965 = vmatprep.subr.bf16.mxu0 0
        %1966 = vmatpush1.bf16.msra.mxu0 0
        %1967 = vmatprep.subr.bf16.mxu0 0
        %1968 = vmatpush1.bf16.msra.mxu0 0
        %1969 = vmatprep.subr.bf16.mxu0 0
        %1970 = vmatpush1.bf16.msra.mxu0 0
        %1971 = vmatprep.mubr.bf16.mxu0 0
        %1972 = vmatmul.mubr.bf16.gmra.mrb[0].mxu0 %v1377
        %v1973 = vpop.f32.mrb[0].mxu0
        %v1974 = vadd.f32 %v1454, %v1973
        %v1975 = vpop.f32.mrb[0].mxu0
        %v1976 = vpop.f32.mrb[0].mxu0
        %v1977 = vadd.f32 %v1454, %v1976
        %v1978 = vpop.f32.mrb[0].mxu0
        %1979 = vmatprep.mubr.bf16.mxu0 0
        %1980 = vmatmul.mubr.bf16.gmra.mrb[0].mxu0 %v1378
        %v1981 = vpop.f32.mrb[0].mxu0
        %v1982 = vadd.f32 %v1454, %v1981
        %v1983 = vpop.f32.mrb[0].mxu0
        %v1984 = vpop.f32.mrb[0].mxu0
        %v1985 = vadd.f32 %v1454, %v1984
        %v1986 = vpop.f32.mrb[0].mxu0
        %1987 = vmatprep.mubr.bf16.mxu0 0
        %1988 = vmatmul.mubr.bf16.gmra.mrb[0].mxu0 %v1379
        %v1989 = vpop.f32.mrb[0].mxu0
        %v1990 = vadd.f32 %v1454, %v1989
        %v1991 = vpop.f32.mrb[0].mxu0
        %v1992 = vpop.f32.mrb[0].mxu0
        %v1993 = vadd.f32 %v1454, %v1992
        %v1994 = vpop.f32.mrb[0].mxu0
        %1995 = vmatprep.mubr.bf16.mxu0 0
        %1996 = vmatmul.mubr.bf16.gmra.mrb[0].mxu0 %v1380
        %v1997 = vpop.f32.mrb[0].mxu0
        %v1998 = vadd.f32 %v1454, %v1997
        %v1999 = vpop.f32.mrb[0].mxu0
        %v2000 = vpop.f32.mrb[0].mxu0
        %v2001 = vadd.f32 %v1454, %v2000
        %v2002 = vpop.f32.mrb[0].mxu0
        %2003 = vmatprep.mubr.bf16.mxu0 0
        %2004 = vmatmul.mubr.bf16.gmra.mrb[0].mxu0 %v1381
        %v2005 = vpop.f32.mrb[0].mxu0
        %v2006 = vadd.f32 %v1454, %v2005
        %v2007 = vpop.f32.mrb[0].mxu0
        %v2008 = vpop.f32.mrb[0].mxu0
        %v2009 = vadd.f32 %v1454, %v2008
        %v2010 = vpop.f32.mrb[0].mxu0
        %2011 = vmatprep.mubr.bf16.mxu0 0
        %2012 = vmatmul.mubr.bf16.gmra.mrb[0].mxu0 %v1382
        %v2013 = vpop.f32.mrb[0].mxu0
        %v2014 = vadd.f32 %v1454, %v2013
        %v2015 = vpop.f32.mrb[0].mxu0
        %v2016 = vpop.f32.mrb[0].mxu0
        %v2017 = vadd.f32 %v1454, %v2016
        %v2018 = vpop.f32.mrb[0].mxu0
        %2019 = vmatprep.mubr.bf16.mxu0 0
        %2020 = vmatmul.mubr.bf16.gmra.mrb[0].mxu0 %v1383
        %v2021 = vpop.f32.mrb[0].mxu0
        %v2022 = vadd.f32 %v1454, %v2021
        %v2023 = vpop.f32.mrb[0].mxu0
        %v2024 = vpop.f32.mrb[0].mxu0
        %v2025 = vadd.f32 %v1454, %v2024
        %v2026 = vpop.f32.mrb[0].mxu0
        %2027 = vmatprep.mubr.bf16.mxu0 0
        %2028 = vmatmul.mubr.bf16.gmra.mrb[0].mxu0 %v1384
        %v2029 = vpop.f32.mrb[0].mxu0
        %v2030 = vadd.f32 %v1454, %v2029
        %v2031 = vpop.f32.mrb[0].mxu0
        %v2032 = vpop.f32.mrb[0].mxu0
        %v2033 = vadd.f32 %v1454, %v2032
        %v2034 = vpop.f32.mrb[0].mxu0
        %2035 = vmatprep.mubr.bf16.mxu0 0
        %2036 = vmatmul.mubr.bf16.gmra.mrb[0].mxu0 %v1385
        %v2037 = vpop.f32.mrb[0].mxu0
        %v2038 = vadd.f32 %v1454, %v2037
        %v2039 = vpop.f32.mrb[0].mxu0
        %v2040 = vpop.f32.mrb[0].mxu0
        %v2041 = vadd.f32 %v1454, %v2040
        %v2042 = vpop.f32.mrb[0].mxu0
        %2043 = vmatprep.mubr.bf16.mxu0 0
        %2044 = vmatmul.mubr.bf16.gmra.mrb[0].mxu0 %v1386
        %v2045 = vpop.f32.mrb[0].mxu0
        %v2046 = vadd.f32 %v1454, %v2045
        %v2047 = vpop.f32.mrb[0].mxu0
        %v2048 = vpop.f32.mrb[0].mxu0
        %v2049 = vadd.f32 %v1454, %v2048
        %v2050 = vpop.f32.mrb[0].mxu0
        %2051 = vmatprep.mubr.bf16.mxu0 0
        %2052 = vmatmul.mubr.bf16.gmra.mrb[0].mxu0 %v1387
        %v2053 = vpop.f32.mrb[0].mxu0
        %v2054 = vadd.f32 %v1454, %v2053
        %v2055 = vpop.f32.mrb[0].mxu0
        %v2056 = vpop.f32.mrb[0].mxu0
        %v2057 = vadd.f32 %v1454, %v2056
        %v2058 = vpop.f32.mrb[0].mxu0
        %2059 = vmatprep.mubr.bf16.mxu0 0
        %2060 = vmatmul.mubr.bf16.gmra.mrb[0].mxu0 %v1388
        %v2061 = vpop.f32.mrb[0].mxu0
        %v2062 = vadd.f32 %v1454, %v2061
        %v2063 = vpop.f32.mrb[0].mxu0
        %v2064 = vpop.f32.mrb[0].mxu0
        %v2065 = vadd.f32 %v1454, %v2064
        %v2066 = vpop.f32.mrb[0].mxu0
        %2067 = vmatprep.mubr.bf16.mxu0 0
        %2068 = vmatmul.mubr.bf16.gmra.mrb[0].mxu0 %v1389
        %v2069 = vpop.f32.mrb[0].mxu0
        %v2070 = vadd.f32 %v1454, %v2069
        %v2071 = vpop.f32.mrb[0].mxu0
        %v2072 = vpop.f32.mrb[0].mxu0
        %v2073 = vadd.f32 %v1454, %v2072
        %v2074 = vpop.f32.mrb[0].mxu0
        %2075 = vmatprep.mubr.bf16.mxu0 0
        %2076 = vmatmul.mubr.bf16.gmra.mrb[0].mxu0 %v1390
        %v2077 = vpop.f32.mrb[0].mxu0
        %v2078 = vadd.f32 %v1454, %v2077
        %v2079 = vpop.f32.mrb[0].mxu0
        %v2080 = vpop.f32.mrb[0].mxu0
        %v2081 = vadd.f32 %v1454, %v2080
        %v2082 = vpop.f32.mrb[0].mxu0
        %2083 = vmatprep.mubr.bf16.mxu0 0
        %2084 = vmatmul.mubr.bf16.gmra.mrb[0].mxu0 %v1391
        %v2085 = vpop.f32.mrb[0].mxu0
        %v2086 = vadd.f32 %v1454, %v2085
        %v2087 = vpop.f32.mrb[0].mxu0
        %v2088 = vpop.f32.mrb[0].mxu0
        %v2089 = vadd.f32 %v1454, %v2088
        %v2090 = vpop.f32.mrb[0].mxu0
        %2091 = vmatprep.mubr.bf16.mxu0 0
        %2092 = vmatmul.mubr.bf16.gmra.mrb[0].mxu0 %v1392
        %v2093 = vpop.f32.mrb[0].mxu0
        %v2094 = vadd.f32 %v1454, %v2093
        %v2095 = vpop.f32.mrb[0].mxu0
        %v2096 = vpop.f32.mrb[0].mxu0
        %v2097 = vadd.f32 %v1454, %v2096
        %v2098 = vpop.f32.mrb[0].mxu0
        %2099 = vmatprep.mubr.bf16.mxu0 0
        %2100 = vmatmul.mubr.bf16.gmra.mrb[0].mxu0 %v1393
        %v2101 = vpop.f32.mrb[0].mxu0
        %v2102 = vadd.f32 %v1454, %v2101
        %v2103 = vpop.f32.mrb[0].mxu0
        %v2104 = vpop.f32.mrb[0].mxu0
        %v2105 = vadd.f32 %v1454, %v2104
        %v2106 = vpop.f32.mrb[0].mxu0
        %2107 = vmatprep.mubr.bf16.mxu0 0
        %2108 = vmatmul.mubr.bf16.gmra.mrb[0].mxu0 %v1394
        %v2109 = vpop.f32.mrb[0].mxu0
        %v2110 = vadd.f32 %v1454, %v2109
        %v2111 = vpop.f32.mrb[0].mxu0
        %v2112 = vpop.f32.mrb[0].mxu0
        %v2113 = vadd.f32 %v1454, %v2112
        %v2114 = vpop.f32.mrb[0].mxu0
        %2115 = vmatprep.mubr.bf16.mxu0 0
        %2116 = vmatmul.mubr.bf16.gmra.mrb[0].mxu0 %v1395
        %v2117 = vpop.f32.mrb[0].mxu0
        %v2118 = vadd.f32 %v1454, %v2117
        %v2119 = vpop.f32.mrb[0].mxu0
        %v2120 = vpop.f32.mrb[0].mxu0
        %v2121 = vadd.f32 %v1454, %v2120
        %v2122 = vpop.f32.mrb[0].mxu0
        %2123 = vmatprep.mubr.bf16.mxu0 0
        %2124 = vmatmul.mubr.bf16.gmra.mrb[0].mxu0 %v1396
        %v2125 = vpop.f32.mrb[0].mxu0
        %v2126 = vadd.f32 %v1454, %v2125
        %v2127 = vpop.f32.mrb[0].mxu0
        %v2128 = vpop.f32.mrb[0].mxu0
        %v2129 = vadd.f32 %v1454, %v2128
        %v2130 = vpop.f32.mrb[0].mxu0
        %2131 = vmatprep.mubr.bf16.mxu0 0
        %2132 = vmatmul.mubr.bf16.gmra.mrb[0].mxu0 %v1397
        %v2133 = vpop.f32.mrb[0].mxu0
        %v2134 = vadd.f32 %v1454, %v2133
        %v2135 = vpop.f32.mrb[0].mxu0
        %v2136 = vpop.f32.mrb[0].mxu0
        %v2137 = vadd.f32 %v1454, %v2136
        %v2138 = vpop.f32.mrb[0].mxu0
        %2139 = vmatprep.mubr.bf16.mxu0 0
        %2140 = vmatmul.mubr.bf16.gmra.mrb[0].mxu0 %v1398
        %v2141 = vpop.f32.mrb[0].mxu0
        %v2142 = vadd.f32 %v1454, %v2141
        %v2143 = vpop.f32.mrb[0].mxu0
        %v2144 = vpop.f32.mrb[0].mxu0
        %v2145 = vadd.f32 %v1454, %v2144
        %v2146 = vpop.f32.mrb[0].mxu0
        %2147 = vmatprep.mubr.bf16.mxu0 0
        %2148 = vmatmul.mubr.bf16.gmra.mrb[0].mxu0 %v1399
        %v2149 = vpop.f32.mrb[0].mxu0
        %v2150 = vadd.f32 %v1454, %v2149
        %v2151 = vpop.f32.mrb[0].mxu0
        %v2152 = vpop.f32.mrb[0].mxu0
        %v2153 = vadd.f32 %v1454, %v2152
        %v2154 = vpop.f32.mrb[0].mxu0
        %2155 = vmatprep.mubr.bf16.mxu0 0
        %2156 = vmatmul.mubr.bf16.gmra.mrb[0].mxu0 %v1400
        %v2157 = vpop.f32.mrb[0].mxu0
        %v2158 = vadd.f32 %v1454, %v2157
        %v2159 = vpop.f32.mrb[0].mxu0
        %v2160 = vpop.f32.mrb[0].mxu0
        %v2161 = vadd.f32 %v1454, %v2160
        %v2162 = vpop.f32.mrb[0].mxu0
        %2163 = vmatprep.mubr.bf16.mxu0 0
        %2164 = vmatmul.mubr.bf16.gmra.mrb[0].mxu0 %v1401
        %v2165 = vpop.f32.mrb[0].mxu0
        %v2166 = vadd.f32 %v1454, %v2165
        %v2167 = vpop.f32.mrb[0].mxu0
        %v2168 = vpop.f32.mrb[0].mxu0
        %v2169 = vadd.f32 %v1454, %v2168
        %v2170 = vpop.f32.mrb[0].mxu0
        %2171 = vmatprep.mubr.bf16.mxu0 0
        %2172 = vmatmul.mubr.bf16.gmra.mrb[0].mxu0 %v1402
        %v2173 = vpop.f32.mrb[0].mxu0
        %v2174 = vadd.f32 %v1454, %v2173
        %v2175 = vpop.f32.mrb[0].mxu0
        %v2176 = vpop.f32.mrb[0].mxu0
        %v2177 = vadd.f32 %v1454, %v2176
        %v2178 = vpop.f32.mrb[0].mxu0
        %2179 = vmatprep.mubr.bf16.mxu0 0
        %2180 = vmatmul.mubr.bf16.gmra.mrb[0].mxu0 %v1403
        %v2181 = vpop.f32.mrb[0].mxu0
        %v2182 = vadd.f32 %v1454, %v2181
        %v2183 = vpop.f32.mrb[0].mxu0
        %v2184 = vpop.f32.mrb[0].mxu0
        %v2185 = vadd.f32 %v1454, %v2184
        %v2186 = vpop.f32.mrb[0].mxu0
        %2187 = vmatprep.mubr.bf16.mxu0 0
        %2188 = vmatmul.mubr.bf16.gmra.mrb[0].mxu0 %v1404
        %v2189 = vpop.f32.mrb[0].mxu0
        %v2190 = vadd.f32 %v1454, %v2189
        %v2191 = vpop.f32.mrb[0].mxu0
        %v2192 = vpop.f32.mrb[0].mxu0
        %v2193 = vadd.f32 %v1454, %v2192
        %v2194 = vpop.f32.mrb[0].mxu0
        %2195 = vmatprep.mubr.bf16.mxu0 0
        %2196 = vmatmul.mubr.bf16.gmra.mrb[0].mxu0 %v1405
        %v2197 = vpop.f32.mrb[0].mxu0
        %v2198 = vadd.f32 %v1454, %v2197
        %v2199 = vpop.f32.mrb[0].mxu0
        %v2200 = vpop.f32.mrb[0].mxu0
        %v2201 = vadd.f32 %v1454, %v2200
        %v2202 = vpop.f32.mrb[0].mxu0
        %2203 = vmatprep.mubr.bf16.mxu0 0
        %2204 = vmatmul.mubr.bf16.gmra.mrb[0].mxu0 %v1406
        %v2205 = vpop.f32.mrb[0].mxu0
        %v2206 = vadd.f32 %v1454, %v2205
        %v2207 = vpop.f32.mrb[0].mxu0
        %v2208 = vpop.f32.mrb[0].mxu0
        %v2209 = vadd.f32 %v1454, %v2208
        %v2210 = vpop.f32.mrb[0].mxu0
        %2211 = vmatprep.mubr.bf16.mxu0 0
        %2212 = vmatmul.mubr.bf16.gmra.mrb[0].mxu0 %v1407
        %v2213 = vpop.f32.mrb[0].mxu0
        %v2214 = vadd.f32 %v1454, %v2213
        %v2215 = vpop.f32.mrb[0].mxu0
        %v2216 = vpop.f32.mrb[0].mxu0
        %v2217 = vadd.f32 %v1454, %v2216
        %v2218 = vpop.f32.mrb[0].mxu0
        %2219 = vmatprep.mubr.bf16.mxu0 0
        %2220 = vmatmul.mubr.bf16.gmra.mrb[0].mxu0 %v1408
        %v2221 = vpop.f32.mrb[0].mxu0
        %v2222 = vadd.f32 %v1454, %v2221
        %v2223 = vpop.f32.mrb[0].mxu0
        %v2224 = vpop.f32.mrb[0].mxu0
        %v2225 = vadd.f32 %v1454, %v2224
        %v2226 = vpop.f32.mrb[0].mxu0
        %2227 = vdwg.mxu0
        %2228 = vst [vmem:[%s349] sm:$0xff] %v1621
        %2229 = vst [vmem:[%s349 + $0x8] sm:$0xff] %v1623
        %vm2230 = vcmask 359424
        %2231 = vst.msk [vmem:[%s349 + $0x10] sm:$0xff] %vm2230, %v1974
        %2232 = vst [vmem:[%s349 + $0x18] sm:$0xff] %v1625
        %2233 = vst [vmem:[%s349 + $0x20] sm:$0xff] %v1627
        %2234 = vst.msk [vmem:[%s349 + $0x28] sm:$0xff] %vm2230, %v1977
        %2235 = vst [vmem:[%s349 + $0x30] sm:$0xff] %v1631
        %2236 = vst [vmem:[%s349 + $0x38] sm:$0xff] %v1633
        %2237 = vst.msk [vmem:[%s349 + $0x40] sm:$0xff] %vm2230, %v1982
        %2238 = vst [vmem:[%s349 + $0x48] sm:$0xff] %v1635
        %2239 = vst [vmem:[%s349 + $0x50] sm:$0xff] %v1637
        %2240 = vst.msk [vmem:[%s349 + $0x58] sm:$0xff] %vm2230, %v1985
        %2241 = vst [vmem:[%s349 + $0x60] sm:$0xff] %v1641
        %2242 = vst [vmem:[%s349 + $0x68] sm:$0xff] %v1643
        %2243 = vst.msk [vmem:[%s349 + $0x70] sm:$0xff] %vm2230, %v1990
        %2244 = vst [vmem:[%s349 + $0x78] sm:$0xff] %v1645
        %2245 = vst [vmem:[%s349 + $0x80] sm:$0xff] %v1647
        %2246 = vst.msk [vmem:[%s349 + $0x88] sm:$0xff] %vm2230, %v1993
        %2247 = vst [vmem:[%s349 + $0x90] sm:$0xff] %v1651
        %2248 = vst [vmem:[%s349 + $0x98] sm:$0xff] %v1653
        %2249 = vst.msk [vmem:[%s349 + $0xa0] sm:$0xff] %vm2230, %v1998
        %2250 = vst [vmem:[%s349 + $0xa8] sm:$0xff] %v1655
        %2251 = vst [vmem:[%s349 + $0xb0] sm:$0xff] %v1657
        %2252 = vst.msk [vmem:[%s349 + $0xb8] sm:$0xff] %vm2230, %v2001
        %2253 = vst [vmem:[%s349 + $0xc0] sm:$0xff] %v1661
        %2254 = vst [vmem:[%s349 + $0xc8] sm:$0xff] %v1663
        %2255 = vst.msk [vmem:[%s349 + $0xd0] sm:$0xff] %vm2230, %v2006
        %2256 = vst [vmem:[%s349 + $0xd8] sm:$0xff] %v1665
        %2257 = vst [vmem:[%s349 + $0xe0] sm:$0xff] %v1667
        %2258 = vst.msk [vmem:[%s349 + $0xe8] sm:$0xff] %vm2230, %v2009
        %2259 = vst [vmem:[%s349 + $0xf0] sm:$0xff] %v1671
        %2260 = vst [vmem:[%s349 + $0xf8] sm:$0xff] %v1673
        %2261 = vst.msk [vmem:[%s349 + $0x100] sm:$0xff] %vm2230, %v2014
        %2262 = vst [vmem:[%s349 + $0x108] sm:$0xff] %v1675
        %2263 = vst [vmem:[%s349 + $0x110] sm:$0xff] %v1677
        %2264 = vst.msk [vmem:[%s349 + $0x118] sm:$0xff] %vm2230, %v2017
        %2265 = vst [vmem:[%s349 + $0x120] sm:$0xff] %v1681
        %2266 = vst [vmem:[%s349 + $0x128] sm:$0xff] %v1683
        %2267 = vst.msk [vmem:[%s349 + $0x130] sm:$0xff] %vm2230, %v2022
        %2268 = vst [vmem:[%s349 + $0x138] sm:$0xff] %v1685
        %2269 = vst [vmem:[%s349 + $0x140] sm:$0xff] %v1687
        %2270 = vst.msk [vmem:[%s349 + $0x148] sm:$0xff] %vm2230, %v2025
        %2271 = vst [vmem:[%s349 + $0x150] sm:$0xff] %v1691
        %2272 = vst [vmem:[%s349 + $0x158] sm:$0xff] %v1693
        %2273 = vst.msk [vmem:[%s349 + $0x160] sm:$0xff] %vm2230, %v2030
        %2274 = vst [vmem:[%s349 + $0x168] sm:$0xff] %v1695
        %2275 = vst [vmem:[%s349 + $0x170] sm:$0xff] %v1697
        %2276 = vst.msk [vmem:[%s349 + $0x178] sm:$0xff] %vm2230, %v2033
        %2277 = vst [vmem:[%s349 + $0x180] sm:$0xff] %v1701
        %2278 = vst [vmem:[%s349 + $0x188] sm:$0xff] %v1703
        %2279 = vst.msk [vmem:[%s349 + $0x190] sm:$0xff] %vm2230, %v2038
        %2280 = vst [vmem:[%s349 + $0x198] sm:$0xff] %v1705
        %2281 = vst [vmem:[%s349 + $0x1a0] sm:$0xff] %v1707
        %2282 = vst.msk [vmem:[%s349 + $0x1a8] sm:$0xff] %vm2230, %v2041
        %2283 = vst [vmem:[%s349 + $0x1b0] sm:$0xff] %v1711
        %2284 = vst [vmem:[%s349 + $0x1b8] sm:$0xff] %v1713
        %2285 = vst.msk [vmem:[%s349 + $0x1c0] sm:$0xff] %vm2230, %v2046
        %2286 = vst [vmem:[%s349 + $0x1c8] sm:$0xff] %v1715
        %2287 = vst [vmem:[%s349 + $0x1d0] sm:$0xff] %v1717
        %2288 = vst.msk [vmem:[%s349 + $0x1d8] sm:$0xff] %vm2230, %v2049
        %2289 = vst [vmem:[%s349 + $0x1e0] sm:$0xff] %v1721
        %2290 = vst [vmem:[%s349 + $0x1e8] sm:$0xff] %v1723
        %2291 = vst.msk [vmem:[%s349 + $0x1f0] sm:$0xff] %vm2230, %v2054
        %2292 = vst [vmem:[%s349 + $0x1f8] sm:$0xff] %v1725
        %2293 = vst [vmem:[%s349 + $0x200] sm:$0xff] %v1727
        %2294 = vst.msk [vmem:[%s349 + $0x208] sm:$0xff] %vm2230, %v2057
        %2295 = vst [vmem:[%s349 + $0x210] sm:$0xff] %v1731
        %2296 = vst [vmem:[%s349 + $0x218] sm:$0xff] %v1733
        %2297 = vst.msk [vmem:[%s349 + $0x220] sm:$0xff] %vm2230, %v2062
        %2298 = vst [vmem:[%s349 + $0x228] sm:$0xff] %v1735
        %2299 = vst [vmem:[%s349 + $0x230] sm:$0xff] %v1737
        %2300 = vst.msk [vmem:[%s349 + $0x238] sm:$0xff] %vm2230, %v2065
        %2301 = vst [vmem:[%s349 + $0x240] sm:$0xff] %v1741
        %2302 = vst [vmem:[%s349 + $0x248] sm:$0xff] %v1743
        %2303 = vst.msk [vmem:[%s349 + $0x250] sm:$0xff] %vm2230, %v2070
        %2304 = vst [vmem:[%s349 + $0x258] sm:$0xff] %v1745
        %2305 = vst [vmem:[%s349 + $0x260] sm:$0xff] %v1747
        %2306 = vst.msk [vmem:[%s349 + $0x268] sm:$0xff] %vm2230, %v2073
        %2307 = vst [vmem:[%s349 + $0x270] sm:$0xff] %v1751
        %2308 = vst [vmem:[%s349 + $0x278] sm:$0xff] %v1753
        %2309 = vst.msk [vmem:[%s349 + $0x280] sm:$0xff] %vm2230, %v2078
        %2310 = vst [vmem:[%s349 + $0x288] sm:$0xff] %v1755
        %2311 = vst [vmem:[%s349 + $0x290] sm:$0xff] %v1757
        %2312 = vst.msk [vmem:[%s349 + $0x298] sm:$0xff] %vm2230, %v2081
        %2313 = vst [vmem:[%s349 + $0x2a0] sm:$0xff] %v1761
        %2314 = vst [vmem:[%s349 + $0x2a8] sm:$0xff] %v1763
        %2315 = vst.msk [vmem:[%s349 + $0x2b0] sm:$0xff] %vm2230, %v2086
        %2316 = vst [vmem:[%s349 + $0x2b8] sm:$0xff] %v1765
        %2317 = vst [vmem:[%s349 + $0x2c0] sm:$0xff] %v1767
        %2318 = vst.msk [vmem:[%s349 + $0x2c8] sm:$0xff] %vm2230, %v2089
        %2319 = vst [vmem:[%s349 + $0x2d0] sm:$0xff] %v1771
        %2320 = vst [vmem:[%s349 + $0x2d8] sm:$0xff] %v1773
        %2321 = vst.msk [vmem:[%s349 + $0x2e0] sm:$0xff] %vm2230, %v2094
        %2322 = vst [vmem:[%s349 + $0x2e8] sm:$0xff] %v1775
        %2323 = vst [vmem:[%s349 + $0x2f0] sm:$0xff] %v1777
        %2324 = vst.msk [vmem:[%s349 + $0x2f8] sm:$0xff] %vm2230, %v2097
        %2325 = vst [vmem:[%s349 + $0x300] sm:$0xff] %v1781
        %2326 = vst [vmem:[%s349 + $0x308] sm:$0xff] %v1783
        %2327 = vst.msk [vmem:[%s349 + $0x310] sm:$0xff] %vm2230, %v2102
        %2328 = vst [vmem:[%s349 + $0x318] sm:$0xff] %v1785
        %2329 = vst [vmem:[%s349 + $0x320] sm:$0xff] %v1787
        %2330 = vst.msk [vmem:[%s349 + $0x328] sm:$0xff] %vm2230, %v2105
        %2331 = vst [vmem:[%s349 + $0x330] sm:$0xff] %v1791
        %2332 = vst [vmem:[%s349 + $0x338] sm:$0xff] %v1793
        %2333 = vst.msk [vmem:[%s349 + $0x340] sm:$0xff] %vm2230, %v2110
        %2334 = vst [vmem:[%s349 + $0x348] sm:$0xff] %v1795
        %2335 = vst [vmem:[%s349 + $0x350] sm:$0xff] %v1797
        %2336 = vst.msk [vmem:[%s349 + $0x358] sm:$0xff] %vm2230, %v2113
        %2337 = vst [vmem:[%s349 + $0x360] sm:$0xff] %v1801
        %2338 = vst [vmem:[%s349 + $0x368] sm:$0xff] %v1803
        %2339 = vst.msk [vmem:[%s349 + $0x370] sm:$0xff] %vm2230, %v2118
        %2340 = vst [vmem:[%s349 + $0x378] sm:$0xff] %v1805
        %2341 = vst [vmem:[%s349 + $0x380] sm:$0xff] %v1807
        %2342 = vst.msk [vmem:[%s349 + $0x388] sm:$0xff] %vm2230, %v2121
        %2343 = vst [vmem:[%s349 + $0x390] sm:$0xff] %v1811
        %2344 = vst [vmem:[%s349 + $0x398] sm:$0xff] %v1813
        %2345 = vst.msk [vmem:[%s349 + $0x3a0] sm:$0xff] %vm2230, %v2126
        %2346 = vst [vmem:[%s349 + $0x3a8] sm:$0xff] %v1815
        %2347 = vst [vmem:[%s349 + $0x3b0] sm:$0xff] %v1817
        %2348 = vst.msk [vmem:[%s349 + $0x3b8] sm:$0xff] %vm2230, %v2129
        %2349 = vst [vmem:[%s349 + $0x3c0] sm:$0xff] %v1821
        %2350 = vst [vmem:[%s349 + $0x3c8] sm:$0xff] %v1823
        %2351 = vst.msk [vmem:[%s349 + $0x3d0] sm:$0xff] %vm2230, %v2134
        %2352 = vst [vmem:[%s349 + $0x3d8] sm:$0xff] %v1825
        %2353 = vst [vmem:[%s349 + $0x3e0] sm:$0xff] %v1827
        %2354 = vst.msk [vmem:[%s349 + $0x3e8] sm:$0xff] %vm2230, %v2137
        %2355 = vst [vmem:[%s349 + $0x3f0] sm:$0xff] %v1831
        %2356 = vst [vmem:[%s349 + $0x3f8] sm:$0xff] %v1833
        %2357 = vst.msk [vmem:[%s349 + $0x400] sm:$0xff] %vm2230, %v2142
        %2358 = vst [vmem:[%s349 + $0x408] sm:$0xff] %v1835
        %2359 = vst [vmem:[%s349 + $0x410] sm:$0xff] %v1837
        %2360 = vst.msk [vmem:[%s349 + $0x418] sm:$0xff] %vm2230, %v2145
        %2361 = vst [vmem:[%s349 + $0x420] sm:$0xff] %v1841
        %2362 = vst [vmem:[%s349 + $0x428] sm:$0xff] %v1843
        %2363 = vst.msk [vmem:[%s349 + $0x430] sm:$0xff] %vm2230, %v2150
        %2364 = vst [vmem:[%s349 + $0x438] sm:$0xff] %v1845
        %2365 = vst [vmem:[%s349 + $0x440] sm:$0xff] %v1847
        %2366 = vst.msk [vmem:[%s349 + $0x448] sm:$0xff] %vm2230, %v2153
        %2367 = vst [vmem:[%s349 + $0x450] sm:$0xff] %v1851
        %2368 = vst [vmem:[%s349 + $0x458] sm:$0xff] %v1853
        %2369 = vst.msk [vmem:[%s349 + $0x460] sm:$0xff] %vm2230, %v2158
        %2370 = vst [vmem:[%s349 + $0x468] sm:$0xff] %v1855
        %2371 = vst [vmem:[%s349 + $0x470] sm:$0xff] %v1857
        %2372 = vst.msk [vmem:[%s349 + $0x478] sm:$0xff] %vm2230, %v2161
        %2373 = vst [vmem:[%s349 + $0x480] sm:$0xff] %v1861
        %2374 = vst [vmem:[%s349 + $0x488] sm:$0xff] %v1863
        %2375 = vst.msk [vmem:[%s349 + $0x490] sm:$0xff] %vm2230, %v2166
        %2376 = vst [vmem:[%s349 + $0x498] sm:$0xff] %v1865
        %2377 = vst [vmem:[%s349 + $0x4a0] sm:$0xff] %v1867
        %2378 = vst.msk [vmem:[%s349 + $0x4a8] sm:$0xff] %vm2230, %v2169
        %2379 = vst [vmem:[%s349 + $0x4b0] sm:$0xff] %v1871
        %2380 = vst [vmem:[%s349 + $0x4b8] sm:$0xff] %v1873
        %2381 = vst.msk [vmem:[%s349 + $0x4c0] sm:$0xff] %vm2230, %v2174
        %2382 = vst [vmem:[%s349 + $0x4c8] sm:$0xff] %v1875
        %2383 = vst [vmem:[%s349 + $0x4d0] sm:$0xff] %v1877
        %2384 = vst.msk [vmem:[%s349 + $0x4d8] sm:$0xff] %vm2230, %v2177
        %2385 = vst [vmem:[%s349 + $0x4e0] sm:$0xff] %v1881
        %2386 = vst [vmem:[%s349 + $0x4e8] sm:$0xff] %v1883
        %2387 = vst.msk [vmem:[%s349 + $0x4f0] sm:$0xff] %vm2230, %v2182
        %2388 = vst [vmem:[%s349 + $0x4f8] sm:$0xff] %v1885
        %2389 = vst [vmem:[%s349 + $0x500] sm:$0xff] %v1887
        %2390 = vst.msk [vmem:[%s349 + $0x508] sm:$0xff] %vm2230, %v2185
        %2391 = vst [vmem:[%s349 + $0x510] sm:$0xff] %v1891
        %2392 = vst [vmem:[%s349 + $0x518] sm:$0xff] %v1893
        %2393 = vst.msk [vmem:[%s349 + $0x520] sm:$0xff] %vm2230, %v2190
        %2394 = vst [vmem:[%s349 + $0x528] sm:$0xff] %v1895
        %2395 = vst [vmem:[%s349 + $0x530] sm:$0xff] %v1897
        %2396 = vst.msk [vmem:[%s349 + $0x538] sm:$0xff] %vm2230, %v2193
        %2397 = vst [vmem:[%s349 + $0x540] sm:$0xff] %v1901
        %2398 = vst [vmem:[%s349 + $0x548] sm:$0xff] %v1903
        %2399 = vst.msk [vmem:[%s349 + $0x550] sm:$0xff] %vm2230, %v2198
        %2400 = vst [vmem:[%s349 + $0x558] sm:$0xff] %v1905
        %2401 = vst [vmem:[%s349 + $0x560] sm:$0xff] %v1907
        %2402 = vst.msk [vmem:[%s349 + $0x568] sm:$0xff] %vm2230, %v2201
        %2403 = vst [vmem:[%s349 + $0x570] sm:$0xff] %v1911
        %2404 = vst [vmem:[%s349 + $0x578] sm:$0xff] %v1913
        %2405 = vst.msk [vmem:[%s349 + $0x580] sm:$0xff] %vm2230, %v2206
        %2406 = vst [vmem:[%s349 + $0x588] sm:$0xff] %v1915
        %2407 = vst [vmem:[%s349 + $0x590] sm:$0xff] %v1917
        %2408 = vst.msk [vmem:[%s349 + $0x598] sm:$0xff] %vm2230, %v2209
        %2409 = vst [vmem:[%s349 + $0x5a0] sm:$0xff] %v1921
        %2410 = vst [vmem:[%s349 + $0x5a8] sm:$0xff] %v1923
        %2411 = vst.msk [vmem:[%s349 + $0x5b0] sm:$0xff] %vm2230, %v2214
        %2412 = vst [vmem:[%s349 + $0x5b8] sm:$0xff] %v1925
        %2413 = vst [vmem:[%s349 + $0x5c0] sm:$0xff] %v1927
        %2414 = vst.msk [vmem:[%s349 + $0x5c8] sm:$0xff] %vm2230, %v2217
        %2415 = vst [vmem:[%s349 + $0x5d0] sm:$0xff] %v1931
        %2416 = vst [vmem:[%s349 + $0x5d8] sm:$0xff] %v1933
        %2417 = vst.msk [vmem:[%s349 + $0x5e0] sm:$0xff] %vm2230, %v2222
        %2418 = vst [vmem:[%s349 + $0x5e8] sm:$0xff] %v1935
        %2419 = vst [vmem:[%s349 + $0x5f0] sm:$0xff] %v1937
        %2420 = vst.msk [vmem:[%s349 + $0x5f8] sm:$0xff] %vm2230, %v2225
        %s2421 = smul.u32 64, %s21
        %p2422 = scmp.lt.s32.totalorder %s2421, 127
        %s2423 = scalar_select %p2422, %s2421, 127
        %s2424 = smul.addr %s2423, 3
        %s2425 = smul.addr %s2424, 8
        %s2426 = scalar_lea.vmem %s7, %s2425
        // Predicated region
        $region69: #{tpu_custom_call.1} parent=47 // pred_check
          %p2427 = pneg %p191
        $region70: #{tpu_custom_call.1} parent=47 // pred_check_branch
          %2429 = sbr.rel (%p2427) target = $region72
        $region71: #{tpu_custom_call.1} parent=47 // pred_region
          %s2430 = smul.u32 64, %s21
        $region72: #{tpu_custom_call.1} parent=47 // pred_fallthru
          _
      $region48: #{tpu_custom_call.1} parent=5 // pred_fallthru
        _
      %p2431 = scmp.le.s32.totalorder 2, %s16
      // Predicated region
      $region73: #{tpu_custom_call.1} parent=5 // pred_check
        %p2432 = pneg %p2431
      $region74: #{tpu_custom_call.1} parent=5 // pred_check_branch
        %2434 = sbr.rel (%p2432) target = $region76
      $region75: #{tpu_custom_call.1} parent=5 // pred_region
        %s2435 = ssub.s32 %s16, 2
        // Predicated region
        $region77: #{tpu_custom_call.1} parent=75 // pred_check
          %p2436 = pneg %p197
        $region78: #{tpu_custom_call.1} parent=75 // pred_check_branch
          %2438 = sbr.rel (%p2436) target = $region80
        $region79: #{tpu_custom_call.1} parent=75 // pred_region
          %s2439 = smul.u32 64, %s22
          %p2440 = scmp.lt.s32.totalorder %s2439, 127
          %s2441 = scalar_select %p2440, %s2439, 127
          %s2442 = smul.addr %s2441, 3
          %s2443 = smul.addr %s2442, 8
          %s2444 = scalar_lea.vmem %s7, %s2443
        $region80: #{tpu_custom_call.1} parent=75 // pred_fallthru
          _
      $region76: #{tpu_custom_call.1} parent=5 // pred_fallthru
        _
    $region6: #{tpu_custom_call.1} parent=1 // loop_footer
      %s20 = sadd.s32 1, %s16
    $region7: #{tpu_custom_call.1} parent=1 // loop_footer_branch
      %15 = sbr.rel target = $region3
    $region8: #{tpu_custom_call.1} parent=1 // loop_exit
      _
    %2445 = vsyncpa [#allocation3], 1
    %s2446 = scalar_lea.sflag [#allocation3], 1
    %2447 = vsyncpa %s2446, 1
    %2448 = vsyncpa [#allocation5], 1
    %2449 = vsyncpa [#allocation8], 1

</llo_original>
